<compile_context>
chip_gen: v6e
topology: v6e:2x2x1
jax: 0.10.0
libtpu: 0.0.40
codegen_flags: <defaults>
</compile_context>

<pallas_src>
import jax
import jax.numpy as jnp
from jax.experimental import pallas as pl
from jax.experimental.pallas import tpu as pltpu


def _next_pow2(x: int) -> int:
    return 1 << max(int(x) - 1, 0).bit_length()


def _round_up(x: int, m: int) -> int:
    return -(-x // m) * m


def _sublane(dtype_bytes: int) -> int:
    return {4: 8, 2: 16, 1: 32}.get(dtype_bytes, 8)


def _vmem_working_set(block_h, N, T, n_pow, cch, cbytes):
    """Estimated double-buffered VMEM bytes for one grid step (lane/sublane padded)."""
    lane = 128
    pow_b = n_pow * block_h * _round_up(N, _sublane(cbytes)) * _round_up(N, lane) * cbytes
    x0_b = block_h * _round_up(N, 8) * lane * 4                    # (1, bh, N, 1) f32
    c_b = cch * block_h * _sublane(cbytes) * _round_up(N, lane) * cbytes
    out_b = cch * block_h * 8 * _round_up(T, lane) * 4             # (cch, bh, 1, T) f32
    return 2 * (pow_b + x0_b + c_b + out_b)


# ----------------------------- Pallas kernel --------------------------------

def _make_krylov_kernel(n_dbl: int, cch: int, compute_dtype):
    """Kernel specialized to T = 2**n_dbl Krylov steps per L block."""

    def kernel(pow_ref, x0_ref, c_ref, k_ref):
        # pow_ref: (n_pow, Hblk, N, N)  compute_dtype, pow_ref[j] = dA^(2^j)
        # x0_ref : (1, Hblk, N, 1)      f32, start state for this L block (column)
        # c_ref  : (Cch, Hblk, 1, N)    compute_dtype
        # k_ref  : (Cch, Hblk, 1, T)    f32 output slab, L (time) on lanes
        X = x0_ref[0].astype(compute_dtype)                      # (Hblk, N, 1)

        # In-block power doubling: X <- [X, dA^(2^j) @ X]  (batched MXU matmuls,
        # static fully-unrolled loop of log2(T) steps, X kept as an SSA value).
        # TODO(synk): seed the first 8 columns with a single stacked-matrix matmul
        # to amortize per-head MXU weight reloads at widths 1/2/4 (review item 4).
        for j in range(n_dbl):
            nxt = jnp.einsum('hnm,hmt->hnt', pow_ref[j], X,
                             preferred_element_type=jnp.float32)
            X = jnp.concatenate([X, nxt.astype(compute_dtype)], axis=-1)

        # Output projection, one lane-dense store per channel (Cch is tiny):
        #   k[c, h, 0, t] = sum_n C[c, h, 0, n] * X[h, n, t]
        for c in range(cch):
            k_ref[c] = jnp.einsum('hon,hnt->hot', c_ref[c], X,
                                  preferred_element_type=jnp.float32
                                  ).astype(k_ref.dtype)

    return kernel


def krylov_pallas(dA, dB, C, L, *, block_l=512, block_h=None,
                  compute_dtype=jnp.bfloat16, vmem_budget_bytes=40 << 20):
    """k[c, h, l] = C[c, h, :] @ dA[h]^l @ dB[h] for l in [0, L); returns (Cch, H, L) f32."""
    H, N, _ = dA.shape
    Cch = C.shape[0]
    L = int(L)
    assert L >= 1
    assert block_l >= 1 and block_l & (block_l - 1) == 0, "block_l must be a power of two"
    cbytes = jnp.dtype(compute_dtype).itemsize

    # ---- tile selection: T steps per L block (power of two so doubling works),
    # block_h heads per head block, constrained by a VMEM working-set budget that
    # is safe on v7x (64 MiB physical) / v5e (small default scoped limit).
    T = min(_next_pow2(L), block_l)
    if block_h is None:
        while True:
            n_pow_try = max(T.bit_length() - 1, 1)
            divs = [d for d in range(H, 0, -1) if H % d == 0]
            fit = [d for d in divs
                   if _vmem_working_set(d, N, T, n_pow_try, Cch, cbytes) <= vmem_budget_bytes]
            if fit:
                block_h = fit[0]
                break
            if T <= 128:
                block_h = 1
                break
            T //= 2
    assert H % block_h == 0
    n_hb = H // block_h
    n_dbl = T.bit_length() - 1
    n_pow_k = max(n_dbl, 1)
    n_lb = -(-L // T)
    Lpad = n_lb * T

    # ---- one-time setup in plain JAX (all f32): power squaring chain and the
    # per-L-block start states x_start[lb] = dA^(lb*T) @ dB.
    dA32 = dA.astype(jnp.float32)
    pows = [dA32]
    for _ in range(n_dbl):
        p = pows[-1]
        pows.append(jnp.einsum('hnm,hmk->hnk', p, p))            # pows[j] = dA^(2^j)
    dA_T = pows[n_dbl]                                           # dA^T (f32)

    dB32 = dB.astype(jnp.float32)
    if n_lb == 1:
        x_starts = dB32[None]                                    # (1, H, N)
    else:
        def step(x, _):
            return jnp.einsum('hnm,hm->hn', dA_T, x), x
        _, x_starts = jax.lax.scan(step, dB32, None, length=n_lb)  # (n_lb, H, N)
    x_starts = x_starts[..., None]                               # (n_lb, H, N, 1) f32

    powers_k = jnp.stack(pows[:n_pow_k], axis=0).astype(compute_dtype)  # (n_pow, H, N, N)
    C_k = C.astype(compute_dtype)[:, :, None, :]                 # (Cch, H, 1, N)

    # ---- cost estimate / VMEM limit
    flops_per_step = 2 * block_h * N * N * (T - 1) + 2 * Cch * block_h * N * T
    total_flops = flops_per_step * n_hb * n_lb
    bytes_accessed = (powers_k.size * cbytes + x_starts.size * 4
                      + C_k.size * cbytes + Cch * H * Lpad * 4)
    ws = _vmem_working_set(block_h, N, T, n_pow_k, Cch, cbytes)
    vmem_limit = int(min(max(ws + (16 << 20), 32 << 20), 96 << 20))

    out4 = pl.pallas_call(
        _make_krylov_kernel(n_dbl, Cch, compute_dtype),
        grid=(n_hb, n_lb),
        in_specs=[
            pl.BlockSpec((n_pow_k, block_h, N, N), lambda hb, lb: (0, hb, 0, 0)),
            pl.BlockSpec((1, block_h, N, 1), lambda hb, lb: (lb, hb, 0, 0)),
            pl.BlockSpec((Cch, block_h, 1, N), lambda hb, lb: (0, hb, 0, 0)),
        ],
        out_specs=pl.BlockSpec((Cch, block_h, 1, T), lambda hb, lb: (0, hb, 0, lb)),
        out_shape=jax.ShapeDtypeStruct((Cch, H, 1, Lpad), jnp.float32),
        compiler_params=pltpu.CompilerParams(
            dimension_semantics=("parallel", "parallel"),   # no carried state: both axes independent
            vmem_limit_bytes=vmem_limit),
        cost_estimate=pl.CostEstimate(flops=int(total_flops), transcendentals=0,
                                      bytes_accessed=int(bytes_accessed)),
    )(powers_k, x_starts, C_k)

    k = out4[:, :, 0, :]                                         # (Cch, H, Lpad)
    return k if Lpad == L else k[..., :L]


# ----------------------------- JAX glue (setup) ------------------------------

def bilinear_jax(dt, A, B):
    """dt: (H,), A: (H,N,N), B: (H,N) -> dA: (H,N,N), dB: (H,N)."""
    N = A.shape[-1]
    I = jnp.eye(N, dtype=A.dtype)
    A_back = I - (dt[:, None, None] / 2.0) * A
    A_fwd = I + (dt[:, None, None] / 2.0) * A
    dB = dt[:, None] * jnp.linalg.solve(A_back, B[..., None])[..., 0]
    dA = jnp.linalg.solve(A_back, A_fwd)
    return dA, dB


def sskernel_slow_forward(A, B, C, log_dt, L, *, compute_dtype=jnp.bfloat16,
                          block_l=512, block_h=None):
    """Equivalent of SSKernelSlow.forward(state=None, rate=1.0, L=L)."""
    dt = jnp.exp(log_dt)
    dA, dB = bilinear_jax(dt, A, B)
    k = krylov_pallas(dA, dB, C, L, block_l=block_l, block_h=block_h,
                      compute_dtype=compute_dtype)
    k_state = None  # TODO(synk): state / k_state path not exercised (state=None)
    return k, k_state


# ----------------------------- reference (pure JAX) ---------------------------

def krylov_ref(dA, dB, C, L):
    ks = []
    x = dB
    for _ in range(L):
        ks.append(jnp.einsum("chn,hn->ch", C, x))
        x = jnp.einsum("hnm,hm->hn", dA, x)
    return jnp.stack(ks, axis=-1)   # (Cch, H, L)


# ----------------------------------- main -------------------------------------

if __name__ == "__main__":
    key = jax.random.PRNGKey(0)
    kA, kB, kC, kdt = jax.random.split(key, 4)

    H, N, Cch, L = 4, 8, 2, 16    # H heads, state size N, C channels, sequence length L

    # Deterministic synthetic parameters (shapes per SSKernelSlow.__init__).
    # A is made Hurwitz-ish so dA is stable (spectral radius < 1).
    A = -(jnp.eye(N, dtype=jnp.float32)[None]
          + 0.1 * jax.random.normal(kA, (H, N, N), dtype=jnp.float32))
    B = jax.random.normal(kB, (H, N), dtype=jnp.float32)
    C = jax.random.normal(kC, (Cch, H, N), dtype=jnp.float32)
    log_dt = jax.random.uniform(
        kdt, (H,), dtype=jnp.float32,
        minval=jnp.log(0.001), maxval=jnp.log(0.1))

    # pure-JAX reference
    dt = jnp.exp(log_dt)
    dA, dB = bilinear_jax(dt, A, B)
    k_ref = jax.block_until_ready(krylov_ref(dA, dB, C, L))
    scale = float(jnp.max(jnp.abs(k_ref))) + 1e-12

    # f32-operand path: tight check
    k_f32, _ = sskernel_slow_forward(A, B, C, log_dt, L, compute_dtype=jnp.float32)
    k_f32 = jax.block_until_ready(k_f32)
    assert k_f32.shape == (Cch, H, L), k_f32.shape
    err32 = float(jnp.max(jnp.abs(k_f32 - k_ref)))
    assert err32 < 1e-4 * max(scale, 1.0), err32

    # bf16-operand / f32-accumulate path (default, fast on MXU): relative check
    k_bf, _ = sskernel_slow_forward(A, B, C, log_dt, L)
    k_bf = jax.block_until_ready(k_bf)
    assert k_bf.shape == (Cch, H, L), k_bf.shape
    errbf = float(jnp.max(jnp.abs(k_bf - k_ref))) / scale
    assert errbf < 5e-2, errbf

    print("KERNEL_OK")
</pallas_src>

<mosaic_0001>
module attributes {stable_mosaic.version = 11 : i64} {
  func.func @kernel(%arg0: i32, %arg1: i32, %arg2: memref<4x4x8x8xf32, #tpu.memory_space<vmem>>, %arg3: memref<1x4x8x1xf32, #tpu.memory_space<vmem>>, %arg4: memref<2x4x1x8xf32, #tpu.memory_space<vmem>>, %arg5: memref<2x4x1x16xf32, #tpu.memory_space<vmem>>) attributes {dimension_semantics = [#tpu.dimension_semantics<parallel>, #tpu.dimension_semantics<parallel>], iteration_bounds = array<i64: 1, 1>, scalar_prefetch = 0 : i64, scratch_operands = 0 : i64, tpu.core_type = #tpu.core_type<tc>, window_params = [{transform_indices = @transform_0, window_bounds = array<i64: 4, 4, 8, 8>}, {transform_indices = @transform_1, window_bounds = array<i64: 1, 4, 8, 1>}, {transform_indices = @transform_2, window_bounds = array<i64: 2, 4, 1, 8>}, {transform_indices = @transform_3, window_bounds = array<i64: 2, 4, 1, 16>}]} {
    %c0 = arith.constant 0 : index
    %c0_0 = arith.constant 0 : index
    %c0_1 = arith.constant 0 : index
    %c0_2 = arith.constant 0 : index
    %0 = vector.load %arg3[%c0, %c0_0, %c0_1, %c0_2] : memref<1x4x8x1xf32, #tpu.memory_space<vmem>>, vector<1x4x8x1xf32>
    %1 = vector.shape_cast %0 : vector<1x4x8x1xf32> to vector<4x8x1xf32>
    %c0_3 = arith.constant 0 : index
    %c0_4 = arith.constant 0 : index
    %c0_5 = arith.constant 0 : index
    %c0_6 = arith.constant 0 : index
    %2 = vector.load %arg2[%c0_3, %c0_4, %c0_5, %c0_6] : memref<4x4x8x8xf32, #tpu.memory_space<vmem>>, vector<1x4x8x8xf32>
    %3 = vector.shape_cast %2 : vector<1x4x8x8xf32> to vector<4x8x8xf32>
    "tpu.trace_start"() <{level = 10 : i32, message = "hnm,hmt->hnt"}> : () -> ()
    %cst = arith.constant dense<0.000000e+00> : vector<4x8x1xf32>
    %4 = tpu.matmul %3, %1, %cst {dimension_numbers = #tpu.dot_dimension_numbers<[2], [1], [1], [2], [0, 0, 0, 1, 1, 2], [0], [0]>} : vector<4x8x8xf32>, vector<4x8x1xf32>, vector<4x8x1xf32> -> vector<4x8x1xf32>
    "tpu.trace_stop"() : () -> ()
    %5 = tpu.concatenate %1, %4 in 2 : vector<4x8x1xf32>, vector<4x8x1xf32> -> vector<4x8x2xf32>
    %c1 = arith.constant 1 : index
    %c0_7 = arith.constant 0 : index
    %c0_8 = arith.constant 0 : index
    %c0_9 = arith.constant 0 : index
    %6 = vector.load %arg2[%c1, %c0_7, %c0_8, %c0_9] : memref<4x4x8x8xf32, #tpu.memory_space<vmem>>, vector<1x4x8x8xf32>
    %7 = vector.shape_cast %6 : vector<1x4x8x8xf32> to vector<4x8x8xf32>
    "tpu.trace_start"() <{level = 10 : i32, message = "hnm,hmt->hnt"}> : () -> ()
    %cst_10 = arith.constant dense<0.000000e+00> : vector<4x8x2xf32>
    %8 = tpu.matmul %7, %5, %cst_10 {dimension_numbers = #tpu.dot_dimension_numbers<[2], [1], [1], [2], [0, 0, 0, 1, 1, 2], [0], [0]>} : vector<4x8x8xf32>, vector<4x8x2xf32>, vector<4x8x2xf32> -> vector<4x8x2xf32>
    "tpu.trace_stop"() : () -> ()
    %9 = tpu.concatenate %5, %8 in 2 : vector<4x8x2xf32>, vector<4x8x2xf32> -> vector<4x8x4xf32>
    %c2 = arith.constant 2 : index
    %c0_11 = arith.constant 0 : index
    %c0_12 = arith.constant 0 : index
    %c0_13 = arith.constant 0 : index
    %10 = vector.load %arg2[%c2, %c0_11, %c0_12, %c0_13] : memref<4x4x8x8xf32, #tpu.memory_space<vmem>>, vector<1x4x8x8xf32>
    %11 = vector.shape_cast %10 : vector<1x4x8x8xf32> to vector<4x8x8xf32>
    "tpu.trace_start"() <{level = 10 : i32, message = "hnm,hmt->hnt"}> : () -> ()
    %cst_14 = arith.constant dense<0.000000e+00> : vector<4x8x4xf32>
    %12 = tpu.matmul %11, %9, %cst_14 {dimension_numbers = #tpu.dot_dimension_numbers<[2], [1], [1], [2], [0, 0, 0, 1, 1, 2], [0], [0]>} : vector<4x8x8xf32>, vector<4x8x4xf32>, vector<4x8x4xf32> -> vector<4x8x4xf32>
    "tpu.trace_stop"() : () -> ()
    %13 = tpu.concatenate %9, %12 in 2 : vector<4x8x4xf32>, vector<4x8x4xf32> -> vector<4x8x8xf32>
    %c3 = arith.constant 3 : index
    %c0_15 = arith.constant 0 : index
    %c0_16 = arith.constant 0 : index
    %c0_17 = arith.constant 0 : index
    %14 = vector.load %arg2[%c3, %c0_15, %c0_16, %c0_17] : memref<4x4x8x8xf32, #tpu.memory_space<vmem>>, vector<1x4x8x8xf32>
    %15 = vector.shape_cast %14 : vector<1x4x8x8xf32> to vector<4x8x8xf32>
    "tpu.trace_start"() <{level = 10 : i32, message = "hnm,hmt->hnt"}> : () -> ()
    %cst_18 = arith.constant dense<0.000000e+00> : vector<4x8x8xf32>
    %16 = tpu.matmul %15, %13, %cst_18 {dimension_numbers = #tpu.dot_dimension_numbers<[2], [1], [1], [2], [0, 0, 0, 1, 1, 2], [0], [0]>} : vector<4x8x8xf32>, vector<4x8x8xf32>, vector<4x8x8xf32> -> vector<4x8x8xf32>
    "tpu.trace_stop"() : () -> ()
    %17 = tpu.concatenate %13, %16 in 2 : vector<4x8x8xf32>, vector<4x8x8xf32> -> vector<4x8x16xf32>
    %c0_19 = arith.constant 0 : index
    %c0_20 = arith.constant 0 : index
    %c0_21 = arith.constant 0 : index
    %c0_22 = arith.constant 0 : index
    %18 = vector.load %arg4[%c0_19, %c0_20, %c0_21, %c0_22] : memref<2x4x1x8xf32, #tpu.memory_space<vmem>>, vector<1x4x1x8xf32>
    %19 = vector.shape_cast %18 : vector<1x4x1x8xf32> to vector<4x1x8xf32>
    "tpu.trace_start"() <{level = 10 : i32, message = "hon,hnt->hot"}> : () -> ()
    %cst_23 = arith.constant dense<0.000000e+00> : vector<4x1x16xf32>
    %20 = tpu.matmul %19, %17, %cst_23 {dimension_numbers = #tpu.dot_dimension_numbers<[2], [1], [1], [2], [0, 0, 0, 1, 1, 2], [0], [0]>} : vector<4x1x8xf32>, vector<4x8x16xf32>, vector<4x1x16xf32> -> vector<4x1x16xf32>
    "tpu.trace_stop"() : () -> ()
    %c0_24 = arith.constant 0 : index
    %c0_25 = arith.constant 0 : index
    %c0_26 = arith.constant 0 : index
    %c0_27 = arith.constant 0 : index
    %21 = vector.load %arg5[%c0_24, %c0_25, %c0_26, %c0_27] : memref<2x4x1x16xf32, #tpu.memory_space<vmem>>, vector<1x4x1x16xf32>
    %22 = vector.shape_cast %21 : vector<1x4x1x16xf32> to vector<4x1x16xf32>
    %23 = vector.shape_cast %20 : vector<4x1x16xf32> to vector<1x4x1x16xf32>
    tpu.vector_store %arg5[%c0_24, %c0_25, %c0_26, %c0_27], %23 {strides = array<i32>} : memref<2x4x1x16xf32, #tpu.memory_space<vmem>>, vector<1x4x1x16xf32>,
    %c1_28 = arith.constant 1 : index
    %c0_29 = arith.constant 0 : index
    %c0_30 = arith.constant 0 : index
    %c0_31 = arith.constant 0 : index
    %24 = vector.load %arg4[%c1_28, %c0_29, %c0_30, %c0_31] : memref<2x4x1x8xf32, #tpu.memory_space<vmem>>, vector<1x4x1x8xf32>
    %25 = vector.shape_cast %24 : vector<1x4x1x8xf32> to vector<4x1x8xf32>
    "tpu.trace_start"() <{level = 10 : i32, message = "hon,hnt->hot"}> : () -> ()
    %cst_32 = arith.constant dense<0.000000e+00> : vector<4x1x16xf32>
    %26 = tpu.matmul %25, %17, %cst_32 {dimension_numbers = #tpu.dot_dimension_numbers<[2], [1], [1], [2], [0, 0, 0, 1, 1, 2], [0], [0]>} : vector<4x1x8xf32>, vector<4x8x16xf32>, vector<4x1x16xf32> -> vector<4x1x16xf32>
    "tpu.trace_stop"() : () -> ()
    %c1_33 = arith.constant 1 : index
    %c0_34 = arith.constant 0 : index
    %c0_35 = arith.constant 0 : index
    %c0_36 = arith.constant 0 : index
    %27 = vector.load %arg5[%c1_33, %c0_34, %c0_35, %c0_36] : memref<2x4x1x16xf32, #tpu.memory_space<vmem>>, vector<1x4x1x16xf32>
    %28 = vector.shape_cast %27 : vector<1x4x1x16xf32> to vector<4x1x16xf32>
    %29 = vector.shape_cast %26 : vector<4x1x16xf32> to vector<1x4x1x16xf32>
    tpu.vector_store %arg5[%c1_33, %c0_34, %c0_35, %c0_36], %29 {strides = array<i32>} : memref<2x4x1x16xf32, #tpu.memory_space<vmem>>, vector<1x4x1x16xf32>,
    return
  }
  func.func @transform_0(%arg0: i32, %arg1: i32) -> (i32, i32, i32, i32) {
    %c0_i32 = arith.constant 0 : i32
    %c0_i32_0 = arith.constant 0 : i32
    %c0_i32_1 = arith.constant 0 : i32
    %c0_i32_2 = arith.constant 0 : i32
    return %c0_i32, %arg0, %c0_i32_0, %c0_i32_1 : i32, i32, i32, i32
  }
  func.func @transform_1(%arg0: i32, %arg1: i32) -> (i32, i32, i32, i32) {
    %c0_i32 = arith.constant 0 : i32
    %c0_i32_0 = arith.constant 0 : i32
    %c0_i32_1 = arith.constant 0 : i32
    return %arg1, %arg0, %c0_i32, %c0_i32_0 : i32, i32, i32, i32
  }
  func.func @transform_2(%arg0: i32, %arg1: i32) -> (i32, i32, i32, i32) {
    %c0_i32 = arith.constant 0 : i32
    %c0_i32_0 = arith.constant 0 : i32
    %c0_i32_1 = arith.constant 0 : i32
    %c0_i32_2 = arith.constant 0 : i32
    return %c0_i32, %arg0, %c0_i32_0, %c0_i32_1 : i32, i32, i32, i32
  }
  func.func @transform_3(%arg0: i32, %arg1: i32) -> (i32, i32, i32, i32) {
    %c0_i32 = arith.constant 0 : i32
    %c0_i32_0 = arith.constant 0 : i32
    %c0_i32_1 = arith.constant 0 : i32
    return %c0_i32, %arg0, %c0_i32_0, %arg1 : i32, i32, i32, i32
  }
}

</mosaic_0001>

<llo_original>
// kernel: tpu_custom_call.1
$region0: #{tpu_custom_call.1}
  #allocation0 [shape = 'u32[]', space=smem, size = 0x4, offset = 0x4, fixed_abs, tag = 'smem constant byte address 0x4 - core index']
  #allocation1 [shape = 'u32[144,128]{1,0:T(1,128)}', space=vmem, size = 0x12000, scoped, tag = 'internal scratch']
  %s0 = inlined_call_operand.hbm [shape: f32[4,4,8,8], index: 0, kind: input, shape index: {}]
  %s1 = inlined_call_operand.vmem [shape: f32[1,4,8,1], index: 1, kind: input, shape index: {}]
  %s2 = inlined_call_operand.vmem [shape: f32[2,4,1,8], index: 2, kind: input, shape index: {}]
  %s3 = inlined_call_operand.hbm [shape: f32[2,4,1,16], index: 3, kind: output, shape index: {}]
  %s4 = sld [smem:[#allocation0]]
  $region26: #{tpu_custom_call.1} parent=0
    _
  %s6 = ssub.s32 1, %s4
  %s7 = scalar_select 0, %s6, %s4
  $region1: #{tpu_custom_call.1} parent=0
    #allocation2 [shape = 'u8[65536]{0}', space=vmem, size = 0x10000, scoped, tag = 'input window, operand 0, single buffered']
    #allocation3 [shape = 's32[1]{0}', space=sflag, size = 0x4, scoped, tag = 'scoped memory for tpu_custom_call.1']
    #allocation4 [shape = 's32[1]{0}', space=sflag, size = 0x4, scoped, tag = 'scoped memory for tpu_custom_call.1']
    #allocation5 [shape = 'u8[4096]{0}', space=vmem, size = 0x1000, scoped, tag = 'output window, operand 0, single buffered']
    %8 = vsyncpa [#allocation3], 0
    %9 = vsyncpa [#allocation4], 0
    // Predicated region
    $region2: #{tpu_custom_call.1} parent=1 // pred_check
      _
    $region3: #{tpu_custom_call.1} parent=1 // pred_check_branch
      %11 = sbr.rel (0) target = $region5
    $region4: #{tpu_custom_call.1} parent=1 // pred_region
      %s13 = ssub.s32 2048, 2048
      %14 = vsyncadd [#allocation3], %s13
      %s15 = sshll.u32 [#allocation2], 4
      %s16 = int_to_ptr.vmem [resolvable:$true] %s15
      %21 = dma.hbm_to_vmem [thread:$0]  %s0, 2048, %s16, [#allocation3], 128, 128, 8
    $region5: #{tpu_custom_call.1} parent=1 // pred_fallthru
      _
    // Predicated region
    $region6: #{tpu_custom_call.1} parent=1 // pred_check
      _
    $region7: #{tpu_custom_call.1} parent=1 // pred_check_branch
      %23 = sbr.rel (0) target = $region9
    $region8: #{tpu_custom_call.1} parent=1 // pred_region
      _
    $region9: #{tpu_custom_call.1} parent=1 // pred_fallthru
      _
    // Predicated region
    $region10: #{tpu_custom_call.1} parent=1 // pred_check
      _
    $region11: #{tpu_custom_call.1} parent=1 // pred_check_branch
      %25 = sbr.rel (0) target = $region13
    $region12: #{tpu_custom_call.1} parent=1 // pred_region
      _
    $region13: #{tpu_custom_call.1} parent=1 // pred_fallthru
      _
    // Predicated region
    $region14: #{tpu_custom_call.1} parent=1 // pred_check
      _
    $region15: #{tpu_custom_call.1} parent=1 // pred_check_branch
      %27 = sbr.rel (0) target = $region17
    $region16: #{tpu_custom_call.1} parent=1 // pred_region
      %28 = dma.done [#allocation3], 2048
    $region17: #{tpu_custom_call.1} parent=1 // pred_fallthru
      _
    %v29 = vld [vmem:[%s1] sm:$0xff]
    %v30 = vld [vmem:[%s1 + $0x8] sm:$0xff]
    %v31 = vld [vmem:[%s1 + $0x10] sm:$0xff]
    %v32 = vld [vmem:[%s1 + $0x18] sm:$0xff]
    %v33 = vld [vmem:[#allocation2] sm:$0xff]
    %v34 = vld [vmem:[#allocation2 + $0x8] sm:$0xff]
    %v35 = vld [vmem:[#allocation2 + $0x10] sm:$0xff]
    %v36 = vld [vmem:[#allocation2 + $0x18] sm:$0xff]
    %vm37 = vcmask 64512
    %v39 = vsel %vm37, %v33, 0
    %41 = vmatprep.subr.mxu0 0.0
    %42 = vmatpush1.msra.mxu0 0.0
    %43 = vmatprep.subr.mxu0 0.0
    %44 = vmatpush1.msra.mxu0 0.0
    %45 = vmatprep.subr.mxu0 0.0
    %46 = vmatpush1.msra.mxu0 0.0
    %47 = vmatprep.subr.mxu0 0.0
    %48 = vmatpush1.msra.mxu0 0.0
    %49 = vmatprep.subr.mxu0 0.0
    %50 = vmatpush1.msra.mxu0 0.0
    %51 = vmatprep.subr.mxu0 0.0
    %52 = vmatpush1.msra.mxu0 0.0
    %53 = vmatprep.subr.mxu0 0.0
    %54 = vmatpush1.msra.mxu0 0.0
    %55 = vmatprep.subr.mxu0 0.0
    %56 = vmatpush1.msra.mxu0 0.0
    %57 = vmatprep.subr.mxu0 0.0
    %58 = vmatpush1.msra.mxu0 0.0
    %59 = vmatprep.subr.mxu0 0.0
    %60 = vmatpush1.msra.mxu0 0.0
    %61 = vmatprep.subr.mxu0 0.0
    %62 = vmatpush1.msra.mxu0 0.0
    %63 = vmatprep.subr.mxu0 0.0
    %64 = vmatpush1.msra.mxu0 0.0
    %65 = vmatprep.subr.mxu0 0.0
    %66 = vmatpush1.msra.mxu0 0.0
    %67 = vmatprep.subr.mxu0 0.0
    %68 = vmatpush1.msra.mxu0 0.0
    %69 = vmatprep.subr.mxu0 0.0
    %70 = vmatpush1.msra.mxu0 0.0
    %71 = vmatprep.subr.mxu0 0.0
    %72 = vmatpush1.msra.mxu0 %v29
    %73 = vmatprep.subr.mxu0 0.0
    %74 = vmatpush2.msra.mxu0 0.0
    %75 = vmatprep.subr.mxu0 0.0
    %76 = vmatpush2.msra.mxu0 0.0
    %77 = vmatprep.subr.mxu0 0.0
    %78 = vmatpush2.msra.mxu0 0.0
    %79 = vmatprep.subr.mxu0 0.0
    %80 = vmatpush2.msra.mxu0 0.0
    %81 = vmatprep.subr.mxu0 0.0
    %82 = vmatpush2.msra.mxu0 0.0
    %83 = vmatprep.subr.mxu0 0.0
    %84 = vmatpush2.msra.mxu0 0.0
    %85 = vmatprep.subr.mxu0 0.0
    %86 = vmatpush2.msra.mxu0 0.0
    %87 = vmatprep.subr.mxu0 0.0
    %88 = vmatpush2.msra.mxu0 0.0
    %89 = vmatprep.subr.mxu0 0.0
    %90 = vmatpush2.msra.mxu0 0.0
    %91 = vmatprep.subr.mxu0 0.0
    %92 = vmatpush2.msra.mxu0 0.0
    %93 = vmatprep.subr.mxu0 0.0
    %94 = vmatpush2.msra.mxu0 0.0
    %95 = vmatprep.subr.mxu0 0.0
    %96 = vmatpush2.msra.mxu0 0.0
    %97 = vmatprep.subr.mxu0 0.0
    %98 = vmatpush2.msra.mxu0 0.0
    %99 = vmatprep.subr.mxu0 0.0
    %100 = vmatpush2.msra.mxu0 0.0
    %101 = vmatprep.subr.mxu0 0.0
    %102 = vmatpush2.msra.mxu0 0.0
    %103 = vmatprep.subr.mxu0 0.0
    %104 = vmatpush2.msra.mxu0 0.0
    %105 = vmatprep.mubr.f32.mxu0 0.0
    %106 = vmatmul.mubr.f32.gmra.mxu0 %v39
    %v107 = vpop.f32.mrf.mxu0
    %v108 = vadd.f32 0.0, %v107
    %v109 = vpop.f32.mrf.mxu0
    %110 = vdwg.mxu0
    %v112 = vsel %vm37, %v34, 0
    %114 = vmatprep.subr.mxu0 0.0
    %115 = vmatpush1.msra.mxu0 0.0
    %116 = vmatprep.subr.mxu0 0.0
    %117 = vmatpush1.msra.mxu0 0.0
    %118 = vmatprep.subr.mxu0 0.0
    %119 = vmatpush1.msra.mxu0 0.0
    %120 = vmatprep.subr.mxu0 0.0
    %121 = vmatpush1.msra.mxu0 0.0
    %122 = vmatprep.subr.mxu0 0.0
    %123 = vmatpush1.msra.mxu0 0.0
    %124 = vmatprep.subr.mxu0 0.0
    %125 = vmatpush1.msra.mxu0 0.0
    %126 = vmatprep.subr.mxu0 0.0
    %127 = vmatpush1.msra.mxu0 0.0
    %128 = vmatprep.subr.mxu0 0.0
    %129 = vmatpush1.msra.mxu0 0.0
    %130 = vmatprep.subr.mxu0 0.0
    %131 = vmatpush1.msra.mxu0 0.0
    %132 = vmatprep.subr.mxu0 0.0
    %133 = vmatpush1.msra.mxu0 0.0
    %134 = vmatprep.subr.mxu0 0.0
    %135 = vmatpush1.msra.mxu0 0.0
    %136 = vmatprep.subr.mxu0 0.0
    %137 = vmatpush1.msra.mxu0 0.0
    %138 = vmatprep.subr.mxu0 0.0
    %139 = vmatpush1.msra.mxu0 0.0
    %140 = vmatprep.subr.mxu0 0.0
    %141 = vmatpush1.msra.mxu0 0.0
    %142 = vmatprep.subr.mxu0 0.0
    %143 = vmatpush1.msra.mxu0 0.0
    %144 = vmatprep.subr.mxu0 0.0
    %145 = vmatpush1.msra.mxu0 %v30
    %146 = vmatprep.subr.mxu0 0.0
    %147 = vmatpush2.msra.mxu0 0.0
    %148 = vmatprep.subr.mxu0 0.0
    %149 = vmatpush2.msra.mxu0 0.0
    %150 = vmatprep.subr.mxu0 0.0
    %151 = vmatpush2.msra.mxu0 0.0
    %152 = vmatprep.subr.mxu0 0.0
    %153 = vmatpush2.msra.mxu0 0.0
    %154 = vmatprep.subr.mxu0 0.0
    %155 = vmatpush2.msra.mxu0 0.0
    %156 = vmatprep.subr.mxu0 0.0
    %157 = vmatpush2.msra.mxu0 0.0
    %158 = vmatprep.subr.mxu0 0.0
    %159 = vmatpush2.msra.mxu0 0.0
    %160 = vmatprep.subr.mxu0 0.0
    %161 = vmatpush2.msra.mxu0 0.0
    %162 = vmatprep.subr.mxu0 0.0
    %163 = vmatpush2.msra.mxu0 0.0
    %164 = vmatprep.subr.mxu0 0.0
    %165 = vmatpush2.msra.mxu0 0.0
    %166 = vmatprep.subr.mxu0 0.0
    %167 = vmatpush2.msra.mxu0 0.0
    %168 = vmatprep.subr.mxu0 0.0
    %169 = vmatpush2.msra.mxu0 0.0
    %170 = vmatprep.subr.mxu0 0.0
    %171 = vmatpush2.msra.mxu0 0.0
    %172 = vmatprep.subr.mxu0 0.0
    %173 = vmatpush2.msra.mxu0 0.0
    %174 = vmatprep.subr.mxu0 0.0
    %175 = vmatpush2.msra.mxu0 0.0
    %176 = vmatprep.subr.mxu0 0.0
    %177 = vmatpush2.msra.mxu0 0.0
    %178 = vmatprep.mubr.f32.mxu0 0.0
    %179 = vmatmul.mubr.f32.gmra.mxu0 %v112
    %v180 = vpop.f32.mrf.mxu0
    %v181 = vadd.f32 0.0, %v180
    %v182 = vpop.f32.mrf.mxu0
    %183 = vdwg.mxu0
    %v185 = vsel %vm37, %v35, 0
    %187 = vmatprep.subr.mxu0 0.0
    %188 = vmatpush1.msra.mxu0 0.0
    %189 = vmatprep.subr.mxu0 0.0
    %190 = vmatpush1.msra.mxu0 0.0
    %191 = vmatprep.subr.mxu0 0.0
    %192 = vmatpush1.msra.mxu0 0.0
    %193 = vmatprep.subr.mxu0 0.0
    %194 = vmatpush1.msra.mxu0 0.0
    %195 = vmatprep.subr.mxu0 0.0
    %196 = vmatpush1.msra.mxu0 0.0
    %197 = vmatprep.subr.mxu0 0.0
    %198 = vmatpush1.msra.mxu0 0.0
    %199 = vmatprep.subr.mxu0 0.0
    %200 = vmatpush1.msra.mxu0 0.0
    %201 = vmatprep.subr.mxu0 0.0
    %202 = vmatpush1.msra.mxu0 0.0
    %203 = vmatprep.subr.mxu0 0.0
    %204 = vmatpush1.msra.mxu0 0.0
    %205 = vmatprep.subr.mxu0 0.0
    %206 = vmatpush1.msra.mxu0 0.0
    %207 = vmatprep.subr.mxu0 0.0
    %208 = vmatpush1.msra.mxu0 0.0
    %209 = vmatprep.subr.mxu0 0.0
    %210 = vmatpush1.msra.mxu0 0.0
    %211 = vmatprep.subr.mxu0 0.0
    %212 = vmatpush1.msra.mxu0 0.0
    %213 = vmatprep.subr.mxu0 0.0
    %214 = vmatpush1.msra.mxu0 0.0
    %215 = vmatprep.subr.mxu0 0.0
    %216 = vmatpush1.msra.mxu0 0.0
    %217 = vmatprep.subr.mxu0 0.0
    %218 = vmatpush1.msra.mxu0 %v31
    %219 = vmatprep.subr.mxu0 0.0
    %220 = vmatpush2.msra.mxu0 0.0
    %221 = vmatprep.subr.mxu0 0.0
    %222 = vmatpush2.msra.mxu0 0.0
    %223 = vmatprep.subr.mxu0 0.0
    %224 = vmatpush2.msra.mxu0 0.0
    %225 = vmatprep.subr.mxu0 0.0
    %226 = vmatpush2.msra.mxu0 0.0
    %227 = vmatprep.subr.mxu0 0.0
    %228 = vmatpush2.msra.mxu0 0.0
    %229 = vmatprep.subr.mxu0 0.0
    %230 = vmatpush2.msra.mxu0 0.0
    %231 = vmatprep.subr.mxu0 0.0
    %232 = vmatpush2.msra.mxu0 0.0
    %233 = vmatprep.subr.mxu0 0.0
    %234 = vmatpush2.msra.mxu0 0.0
    %235 = vmatprep.subr.mxu0 0.0
    %236 = vmatpush2.msra.mxu0 0.0
    %237 = vmatprep.subr.mxu0 0.0
    %238 = vmatpush2.msra.mxu0 0.0
    %239 = vmatprep.subr.mxu0 0.0
    %240 = vmatpush2.msra.mxu0 0.0
    %241 = vmatprep.subr.mxu0 0.0
    %242 = vmatpush2.msra.mxu0 0.0
    %243 = vmatprep.subr.mxu0 0.0
    %244 = vmatpush2.msra.mxu0 0.0
    %245 = vmatprep.subr.mxu0 0.0
    %246 = vmatpush2.msra.mxu0 0.0
    %247 = vmatprep.subr.mxu0 0.0
    %248 = vmatpush2.msra.mxu0 0.0
    %249 = vmatprep.subr.mxu0 0.0
    %250 = vmatpush2.msra.mxu0 0.0
    %251 = vmatprep.mubr.f32.mxu0 0.0
    %252 = vmatmul.mubr.f32.gmra.mxu0 %v185
    %v253 = vpop.f32.mrf.mxu0
    %v254 = vadd.f32 0.0, %v253
    %v255 = vpop.f32.mrf.mxu0
    %256 = vdwg.mxu0
    %v258 = vsel %vm37, %v36, 0
    %260 = vmatprep.subr.mxu0 0.0
    %261 = vmatpush1.msra.mxu0 0.0
    %262 = vmatprep.subr.mxu0 0.0
    %263 = vmatpush1.msra.mxu0 0.0
    %264 = vmatprep.subr.mxu0 0.0
    %265 = vmatpush1.msra.mxu0 0.0
    %266 = vmatprep.subr.mxu0 0.0
    %267 = vmatpush1.msra.mxu0 0.0
    %268 = vmatprep.subr.mxu0 0.0
    %269 = vmatpush1.msra.mxu0 0.0
    %270 = vmatprep.subr.mxu0 0.0
    %271 = vmatpush1.msra.mxu0 0.0
    %272 = vmatprep.subr.mxu0 0.0
    %273 = vmatpush1.msra.mxu0 0.0
    %274 = vmatprep.subr.mxu0 0.0
    %275 = vmatpush1.msra.mxu0 0.0
    %276 = vmatprep.subr.mxu0 0.0
    %277 = vmatpush1.msra.mxu0 0.0
    %278 = vmatprep.subr.mxu0 0.0
    %279 = vmatpush1.msra.mxu0 0.0
    %280 = vmatprep.subr.mxu0 0.0
    %281 = vmatpush1.msra.mxu0 0.0
    %282 = vmatprep.subr.mxu0 0.0
    %283 = vmatpush1.msra.mxu0 0.0
    %284 = vmatprep.subr.mxu0 0.0
    %285 = vmatpush1.msra.mxu0 0.0
    %286 = vmatprep.subr.mxu0 0.0
    %287 = vmatpush1.msra.mxu0 0.0
    %288 = vmatprep.subr.mxu0 0.0
    %289 = vmatpush1.msra.mxu0 0.0
    %290 = vmatprep.subr.mxu0 0.0
    %291 = vmatpush1.msra.mxu0 %v32
    %292 = vmatprep.subr.mxu0 0.0
    %293 = vmatpush2.msra.mxu0 0.0
    %294 = vmatprep.subr.mxu0 0.0
    %295 = vmatpush2.msra.mxu0 0.0
    %296 = vmatprep.subr.mxu0 0.0
    %297 = vmatpush2.msra.mxu0 0.0
    %298 = vmatprep.subr.mxu0 0.0
    %299 = vmatpush2.msra.mxu0 0.0
    %300 = vmatprep.subr.mxu0 0.0
    %301 = vmatpush2.msra.mxu0 0.0
    %302 = vmatprep.subr.mxu0 0.0
    %303 = vmatpush2.msra.mxu0 0.0
    %304 = vmatprep.subr.mxu0 0.0
    %305 = vmatpush2.msra.mxu0 0.0
    %306 = vmatprep.subr.mxu0 0.0
    %307 = vmatpush2.msra.mxu0 0.0
    %308 = vmatprep.subr.mxu0 0.0
    %309 = vmatpush2.msra.mxu0 0.0
    %310 = vmatprep.subr.mxu0 0.0
    %311 = vmatpush2.msra.mxu0 0.0
    %312 = vmatprep.subr.mxu0 0.0
    %313 = vmatpush2.msra.mxu0 0.0
    %314 = vmatprep.subr.mxu0 0.0
    %315 = vmatpush2.msra.mxu0 0.0
    %316 = vmatprep.subr.mxu0 0.0
    %317 = vmatpush2.msra.mxu0 0.0
    %318 = vmatprep.subr.mxu0 0.0
    %319 = vmatpush2.msra.mxu0 0.0
    %320 = vmatprep.subr.mxu0 0.0
    %321 = vmatpush2.msra.mxu0 0.0
    %322 = vmatprep.subr.mxu0 0.0
    %323 = vmatpush2.msra.mxu0 0.0
    %324 = vmatprep.mubr.f32.mxu0 0.0
    %325 = vmatmul.mubr.f32.gmra.mxu0 %v258
    %v326 = vpop.f32.mrf.mxu0
    %v327 = vadd.f32 0.0, %v326
    %v328 = vpop.f32.mrf.mxu0
    %329 = vdwg.mxu0
    %334 = vrot.lane.b32.xlu0 %v108, 1
    %v335 = vpop.permute.xlu0 %334
    %336 = vrot.lane.b32.xlu0 %v181, 1
    %v337 = vpop.permute.xlu0 %336
    %338 = vrot.lane.b32.xlu0 %v254, 1
    %v339 = vpop.permute.xlu0 %338
    %340 = vrot.lane.b32.xlu0 %v327, 1
    %v341 = vpop.permute.xlu0 %340
    %vm346 = vcmask 7168
    %v347 = vsel %vm346, %v29, %v335
    %v348 = vsel %vm346, %v30, %v337
    %v349 = vsel %vm346, %v31, %v339
    %v350 = vsel %vm346, %v32, %v341
    %s351 = scalar_lea.vmem [#allocation2], 32
    %v352 = vld [vmem:[%s351] sm:$0xff]
    %v353 = vld [vmem:[%s351 + $0x8] sm:$0xff]
    %v354 = vld [vmem:[%s351 + $0x10] sm:$0xff]
    %v355 = vld [vmem:[%s351 + $0x18] sm:$0xff]
    %v357 = vsel %vm37, %v352, 0
    %359 = vmatprep.subr.mxu0 0.0
    %360 = vmatpush1.msra.mxu0 0.0
    %361 = vmatprep.subr.mxu0 0.0
    %362 = vmatpush1.msra.mxu0 0.0
    %363 = vmatprep.subr.mxu0 0.0
    %364 = vmatpush1.msra.mxu0 0.0
    %365 = vmatprep.subr.mxu0 0.0
    %366 = vmatpush1.msra.mxu0 0.0
    %367 = vmatprep.subr.mxu0 0.0
    %368 = vmatpush1.msra.mxu0 0.0
    %369 = vmatprep.subr.mxu0 0.0
    %370 = vmatpush1.msra.mxu0 0.0
    %371 = vmatprep.subr.mxu0 0.0
    %372 = vmatpush1.msra.mxu0 0.0
    %373 = vmatprep.subr.mxu0 0.0
    %374 = vmatpush1.msra.mxu0 0.0
    %375 = vmatprep.subr.mxu0 0.0
    %376 = vmatpush1.msra.mxu0 0.0
    %377 = vmatprep.subr.mxu0 0.0
    %378 = vmatpush1.msra.mxu0 0.0
    %379 = vmatprep.subr.mxu0 0.0
    %380 = vmatpush1.msra.mxu0 0.0
    %381 = vmatprep.subr.mxu0 0.0
    %382 = vmatpush1.msra.mxu0 0.0
    %383 = vmatprep.subr.mxu0 0.0
    %384 = vmatpush1.msra.mxu0 0.0
    %385 = vmatprep.subr.mxu0 0.0
    %386 = vmatpush1.msra.mxu0 0.0
    %387 = vmatprep.subr.mxu0 0.0
    %388 = vmatpush1.msra.mxu0 0.0
    %389 = vmatprep.subr.mxu0 0.0
    %390 = vmatpush1.msra.mxu0 %v347
    %391 = vmatprep.subr.mxu0 0.0
    %392 = vmatpush2.msra.mxu0 0.0
    %393 = vmatprep.subr.mxu0 0.0
    %394 = vmatpush2.msra.mxu0 0.0
    %395 = vmatprep.subr.mxu0 0.0
    %396 = vmatpush2.msra.mxu0 0.0
    %397 = vmatprep.subr.mxu0 0.0
    %398 = vmatpush2.msra.mxu0 0.0
    %399 = vmatprep.subr.mxu0 0.0
    %400 = vmatpush2.msra.mxu0 0.0
    %401 = vmatprep.subr.mxu0 0.0
    %402 = vmatpush2.msra.mxu0 0.0
    %403 = vmatprep.subr.mxu0 0.0
    %404 = vmatpush2.msra.mxu0 0.0
    %405 = vmatprep.subr.mxu0 0.0
    %406 = vmatpush2.msra.mxu0 0.0
    %407 = vmatprep.subr.mxu0 0.0
    %408 = vmatpush2.msra.mxu0 0.0
    %409 = vmatprep.subr.mxu0 0.0
    %410 = vmatpush2.msra.mxu0 0.0
    %411 = vmatprep.subr.mxu0 0.0
    %412 = vmatpush2.msra.mxu0 0.0
    %413 = vmatprep.subr.mxu0 0.0
    %414 = vmatpush2.msra.mxu0 0.0
    %415 = vmatprep.subr.mxu0 0.0
    %416 = vmatpush2.msra.mxu0 0.0
    %417 = vmatprep.subr.mxu0 0.0
    %418 = vmatpush2.msra.mxu0 0.0
    %419 = vmatprep.subr.mxu0 0.0
    %420 = vmatpush2.msra.mxu0 0.0
    %421 = vmatprep.subr.mxu0 0.0
    %422 = vmatpush2.msra.mxu0 0.0
    %423 = vmatprep.mubr.f32.mxu0 0.0
    %424 = vmatmul.mubr.f32.gmra.mxu0 %v357
    %v425 = vpop.f32.mrf.mxu0
    %v426 = vadd.f32 0.0, %v425
    %v427 = vpop.f32.mrf.mxu0
    %428 = vdwg.mxu0
    %v430 = vsel %vm37, %v353, 0
    %432 = vmatprep.subr.mxu0 0.0
    %433 = vmatpush1.msra.mxu0 0.0
    %434 = vmatprep.subr.mxu0 0.0
    %435 = vmatpush1.msra.mxu0 0.0
    %436 = vmatprep.subr.mxu0 0.0
    %437 = vmatpush1.msra.mxu0 0.0
    %438 = vmatprep.subr.mxu0 0.0
    %439 = vmatpush1.msra.mxu0 0.0
    %440 = vmatprep.subr.mxu0 0.0
    %441 = vmatpush1.msra.mxu0 0.0
    %442 = vmatprep.subr.mxu0 0.0
    %443 = vmatpush1.msra.mxu0 0.0
    %444 = vmatprep.subr.mxu0 0.0
    %445 = vmatpush1.msra.mxu0 0.0
    %446 = vmatprep.subr.mxu0 0.0
    %447 = vmatpush1.msra.mxu0 0.0
    %448 = vmatprep.subr.mxu0 0.0
    %449 = vmatpush1.msra.mxu0 0.0
    %450 = vmatprep.subr.mxu0 0.0
    %451 = vmatpush1.msra.mxu0 0.0
    %452 = vmatprep.subr.mxu0 0.0
    %453 = vmatpush1.msra.mxu0 0.0
    %454 = vmatprep.subr.mxu0 0.0
    %455 = vmatpush1.msra.mxu0 0.0
    %456 = vmatprep.subr.mxu0 0.0
    %457 = vmatpush1.msra.mxu0 0.0
    %458 = vmatprep.subr.mxu0 0.0
    %459 = vmatpush1.msra.mxu0 0.0
    %460 = vmatprep.subr.mxu0 0.0
    %461 = vmatpush1.msra.mxu0 0.0
    %462 = vmatprep.subr.mxu0 0.0
    %463 = vmatpush1.msra.mxu0 %v348
    %464 = vmatprep.subr.mxu0 0.0
    %465 = vmatpush2.msra.mxu0 0.0
    %466 = vmatprep.subr.mxu0 0.0
    %467 = vmatpush2.msra.mxu0 0.0
    %468 = vmatprep.subr.mxu0 0.0
    %469 = vmatpush2.msra.mxu0 0.0
    %470 = vmatprep.subr.mxu0 0.0
    %471 = vmatpush2.msra.mxu0 0.0
    %472 = vmatprep.subr.mxu0 0.0
    %473 = vmatpush2.msra.mxu0 0.0
    %474 = vmatprep.subr.mxu0 0.0
    %475 = vmatpush2.msra.mxu0 0.0
    %476 = vmatprep.subr.mxu0 0.0
    %477 = vmatpush2.msra.mxu0 0.0
    %478 = vmatprep.subr.mxu0 0.0
    %479 = vmatpush2.msra.mxu0 0.0
    %480 = vmatprep.subr.mxu0 0.0
    %481 = vmatpush2.msra.mxu0 0.0
    %482 = vmatprep.subr.mxu0 0.0
    %483 = vmatpush2.msra.mxu0 0.0
    %484 = vmatprep.subr.mxu0 0.0
    %485 = vmatpush2.msra.mxu0 0.0
    %486 = vmatprep.subr.mxu0 0.0
    %487 = vmatpush2.msra.mxu0 0.0
    %488 = vmatprep.subr.mxu0 0.0
    %489 = vmatpush2.msra.mxu0 0.0
    %490 = vmatprep.subr.mxu0 0.0
    %491 = vmatpush2.msra.mxu0 0.0
    %492 = vmatprep.subr.mxu0 0.0
    %493 = vmatpush2.msra.mxu0 0.0
    %494 = vmatprep.subr.mxu0 0.0
    %495 = vmatpush2.msra.mxu0 0.0
    %496 = vmatprep.mubr.f32.mxu0 0.0
    %497 = vmatmul.mubr.f32.gmra.mxu0 %v430
    %v498 = vpop.f32.mrf.mxu0
    %v499 = vadd.f32 0.0, %v498
    %v500 = vpop.f32.mrf.mxu0
    %501 = vdwg.mxu0
    %v503 = vsel %vm37, %v354, 0
    %505 = vmatprep.subr.mxu0 0.0
    %506 = vmatpush1.msra.mxu0 0.0
    %507 = vmatprep.subr.mxu0 0.0
    %508 = vmatpush1.msra.mxu0 0.0
    %509 = vmatprep.subr.mxu0 0.0
    %510 = vmatpush1.msra.mxu0 0.0
    %511 = vmatprep.subr.mxu0 0.0
    %512 = vmatpush1.msra.mxu0 0.0
    %513 = vmatprep.subr.mxu0 0.0
    %514 = vmatpush1.msra.mxu0 0.0
    %515 = vmatprep.subr.mxu0 0.0
    %516 = vmatpush1.msra.mxu0 0.0
    %517 = vmatprep.subr.mxu0 0.0
    %518 = vmatpush1.msra.mxu0 0.0
    %519 = vmatprep.subr.mxu0 0.0
    %520 = vmatpush1.msra.mxu0 0.0
    %521 = vmatprep.subr.mxu0 0.0
    %522 = vmatpush1.msra.mxu0 0.0
    %523 = vmatprep.subr.mxu0 0.0
    %524 = vmatpush1.msra.mxu0 0.0
    %525 = vmatprep.subr.mxu0 0.0
    %526 = vmatpush1.msra.mxu0 0.0
    %527 = vmatprep.subr.mxu0 0.0
    %528 = vmatpush1.msra.mxu0 0.0
    %529 = vmatprep.subr.mxu0 0.0
    %530 = vmatpush1.msra.mxu0 0.0
    %531 = vmatprep.subr.mxu0 0.0
    %532 = vmatpush1.msra.mxu0 0.0
    %533 = vmatprep.subr.mxu0 0.0
    %534 = vmatpush1.msra.mxu0 0.0
    %535 = vmatprep.subr.mxu0 0.0
    %536 = vmatpush1.msra.mxu0 %v349
    %537 = vmatprep.subr.mxu0 0.0
    %538 = vmatpush2.msra.mxu0 0.0
    %539 = vmatprep.subr.mxu0 0.0
    %540 = vmatpush2.msra.mxu0 0.0
    %541 = vmatprep.subr.mxu0 0.0
    %542 = vmatpush2.msra.mxu0 0.0
    %543 = vmatprep.subr.mxu0 0.0
    %544 = vmatpush2.msra.mxu0 0.0
    %545 = vmatprep.subr.mxu0 0.0
    %546 = vmatpush2.msra.mxu0 0.0
    %547 = vmatprep.subr.mxu0 0.0
    %548 = vmatpush2.msra.mxu0 0.0
    %549 = vmatprep.subr.mxu0 0.0
    %550 = vmatpush2.msra.mxu0 0.0
    %551 = vmatprep.subr.mxu0 0.0
    %552 = vmatpush2.msra.mxu0 0.0
    %553 = vmatprep.subr.mxu0 0.0
    %554 = vmatpush2.msra.mxu0 0.0
    %555 = vmatprep.subr.mxu0 0.0
    %556 = vmatpush2.msra.mxu0 0.0
    %557 = vmatprep.subr.mxu0 0.0
    %558 = vmatpush2.msra.mxu0 0.0
    %559 = vmatprep.subr.mxu0 0.0
    %560 = vmatpush2.msra.mxu0 0.0
    %561 = vmatprep.subr.mxu0 0.0
    %562 = vmatpush2.msra.mxu0 0.0
    %563 = vmatprep.subr.mxu0 0.0
    %564 = vmatpush2.msra.mxu0 0.0
    %565 = vmatprep.subr.mxu0 0.0
    %566 = vmatpush2.msra.mxu0 0.0
    %567 = vmatprep.subr.mxu0 0.0
    %568 = vmatpush2.msra.mxu0 0.0
    %569 = vmatprep.mubr.f32.mxu0 0.0
    %570 = vmatmul.mubr.f32.gmra.mxu0 %v503
    %v571 = vpop.f32.mrf.mxu0
    %v572 = vadd.f32 0.0, %v571
    %v573 = vpop.f32.mrf.mxu0
    %574 = vdwg.mxu0
    %v576 = vsel %vm37, %v355, 0
    %578 = vmatprep.subr.mxu0 0.0
    %579 = vmatpush1.msra.mxu0 0.0
    %580 = vmatprep.subr.mxu0 0.0
    %581 = vmatpush1.msra.mxu0 0.0
    %582 = vmatprep.subr.mxu0 0.0
    %583 = vmatpush1.msra.mxu0 0.0
    %584 = vmatprep.subr.mxu0 0.0
    %585 = vmatpush1.msra.mxu0 0.0
    %586 = vmatprep.subr.mxu0 0.0
    %587 = vmatpush1.msra.mxu0 0.0
    %588 = vmatprep.subr.mxu0 0.0
    %589 = vmatpush1.msra.mxu0 0.0
    %590 = vmatprep.subr.mxu0 0.0
    %591 = vmatpush1.msra.mxu0 0.0
    %592 = vmatprep.subr.mxu0 0.0
    %593 = vmatpush1.msra.mxu0 0.0
    %594 = vmatprep.subr.mxu0 0.0
    %595 = vmatpush1.msra.mxu0 0.0
    %596 = vmatprep.subr.mxu0 0.0
    %597 = vmatpush1.msra.mxu0 0.0
    %598 = vmatprep.subr.mxu0 0.0
    %599 = vmatpush1.msra.mxu0 0.0
    %600 = vmatprep.subr.mxu0 0.0
    %601 = vmatpush1.msra.mxu0 0.0
    %602 = vmatprep.subr.mxu0 0.0
    %603 = vmatpush1.msra.mxu0 0.0
    %604 = vmatprep.subr.mxu0 0.0
    %605 = vmatpush1.msra.mxu0 0.0
    %606 = vmatprep.subr.mxu0 0.0
    %607 = vmatpush1.msra.mxu0 0.0
    %608 = vmatprep.subr.mxu0 0.0
    %609 = vmatpush1.msra.mxu0 %v350
    %610 = vmatprep.subr.mxu0 0.0
    %611 = vmatpush2.msra.mxu0 0.0
    %612 = vmatprep.subr.mxu0 0.0
    %613 = vmatpush2.msra.mxu0 0.0
    %614 = vmatprep.subr.mxu0 0.0
    %615 = vmatpush2.msra.mxu0 0.0
    %616 = vmatprep.subr.mxu0 0.0
    %617 = vmatpush2.msra.mxu0 0.0
    %618 = vmatprep.subr.mxu0 0.0
    %619 = vmatpush2.msra.mxu0 0.0
    %620 = vmatprep.subr.mxu0 0.0
    %621 = vmatpush2.msra.mxu0 0.0
    %622 = vmatprep.subr.mxu0 0.0
    %623 = vmatpush2.msra.mxu0 0.0
    %624 = vmatprep.subr.mxu0 0.0
    %625 = vmatpush2.msra.mxu0 0.0
    %626 = vmatprep.subr.mxu0 0.0
    %627 = vmatpush2.msra.mxu0 0.0
    %628 = vmatprep.subr.mxu0 0.0
    %629 = vmatpush2.msra.mxu0 0.0
    %630 = vmatprep.subr.mxu0 0.0
    %631 = vmatpush2.msra.mxu0 0.0
    %632 = vmatprep.subr.mxu0 0.0
    %633 = vmatpush2.msra.mxu0 0.0
    %634 = vmatprep.subr.mxu0 0.0
    %635 = vmatpush2.msra.mxu0 0.0
    %636 = vmatprep.subr.mxu0 0.0
    %637 = vmatpush2.msra.mxu0 0.0
    %638 = vmatprep.subr.mxu0 0.0
    %639 = vmatpush2.msra.mxu0 0.0
    %640 = vmatprep.subr.mxu0 0.0
    %641 = vmatpush2.msra.mxu0 0.0
    %642 = vmatprep.mubr.f32.mxu0 0.0
    %643 = vmatmul.mubr.f32.gmra.mxu0 %v576
    %v644 = vpop.f32.mrf.mxu0
    %v645 = vadd.f32 0.0, %v644
    %v646 = vpop.f32.mrf.mxu0
    %647 = vdwg.mxu0
    %652 = vrot.lane.b32.xlu0 %v426, 2
    %v653 = vpop.permute.xlu0 %652
    %654 = vrot.lane.b32.xlu0 %v499, 2
    %v655 = vpop.permute.xlu0 %654
    %656 = vrot.lane.b32.xlu0 %v572, 2
    %v657 = vpop.permute.xlu0 %656
    %658 = vrot.lane.b32.xlu0 %v645, 2
    %v659 = vpop.permute.xlu0 %658
    %vm664 = vcmask 15360
    %v665 = vsel %vm664, %v347, %v653
    %v666 = vsel %vm664, %v348, %v655
    %v667 = vsel %vm664, %v349, %v657
    %v668 = vsel %vm664, %v350, %v659
    %s669 = scalar_lea.vmem [#allocation2], 64
    %v670 = vld [vmem:[%s669] sm:$0xff]
    %v671 = vld [vmem:[%s669 + $0x8] sm:$0xff]
    %v672 = vld [vmem:[%s669 + $0x10] sm:$0xff]
    %v673 = vld [vmem:[%s669 + $0x18] sm:$0xff]
    %v675 = vsel %vm37, %v670, 0
    %677 = vmatprep.subr.mxu0 0.0
    %678 = vmatpush1.msra.mxu0 0.0
    %679 = vmatprep.subr.mxu0 0.0
    %680 = vmatpush1.msra.mxu0 0.0
    %681 = vmatprep.subr.mxu0 0.0
    %682 = vmatpush1.msra.mxu0 0.0
    %683 = vmatprep.subr.mxu0 0.0
    %684 = vmatpush1.msra.mxu0 0.0
    %685 = vmatprep.subr.mxu0 0.0
    %686 = vmatpush1.msra.mxu0 0.0
    %687 = vmatprep.subr.mxu0 0.0
    %688 = vmatpush1.msra.mxu0 0.0
    %689 = vmatprep.subr.mxu0 0.0
    %690 = vmatpush1.msra.mxu0 0.0
    %691 = vmatprep.subr.mxu0 0.0
    %692 = vmatpush1.msra.mxu0 0.0
    %693 = vmatprep.subr.mxu0 0.0
    %694 = vmatpush1.msra.mxu0 0.0
    %695 = vmatprep.subr.mxu0 0.0
    %696 = vmatpush1.msra.mxu0 0.0
    %697 = vmatprep.subr.mxu0 0.0
    %698 = vmatpush1.msra.mxu0 0.0
    %699 = vmatprep.subr.mxu0 0.0
    %700 = vmatpush1.msra.mxu0 0.0
    %701 = vmatprep.subr.mxu0 0.0
    %702 = vmatpush1.msra.mxu0 0.0
    %703 = vmatprep.subr.mxu0 0.0
    %704 = vmatpush1.msra.mxu0 0.0
    %705 = vmatprep.subr.mxu0 0.0
    %706 = vmatpush1.msra.mxu0 0.0
    %707 = vmatprep.subr.mxu0 0.0
    %708 = vmatpush1.msra.mxu0 %v665
    %709 = vmatprep.subr.mxu0 0.0
    %710 = vmatpush2.msra.mxu0 0.0
    %711 = vmatprep.subr.mxu0 0.0
    %712 = vmatpush2.msra.mxu0 0.0
    %713 = vmatprep.subr.mxu0 0.0
    %714 = vmatpush2.msra.mxu0 0.0
    %715 = vmatprep.subr.mxu0 0.0
    %716 = vmatpush2.msra.mxu0 0.0
    %717 = vmatprep.subr.mxu0 0.0
    %718 = vmatpush2.msra.mxu0 0.0
    %719 = vmatprep.subr.mxu0 0.0
    %720 = vmatpush2.msra.mxu0 0.0
    %721 = vmatprep.subr.mxu0 0.0
    %722 = vmatpush2.msra.mxu0 0.0
    %723 = vmatprep.subr.mxu0 0.0
    %724 = vmatpush2.msra.mxu0 0.0
    %725 = vmatprep.subr.mxu0 0.0
    %726 = vmatpush2.msra.mxu0 0.0
    %727 = vmatprep.subr.mxu0 0.0
    %728 = vmatpush2.msra.mxu0 0.0
    %729 = vmatprep.subr.mxu0 0.0
    %730 = vmatpush2.msra.mxu0 0.0
    %731 = vmatprep.subr.mxu0 0.0
    %732 = vmatpush2.msra.mxu0 0.0
    %733 = vmatprep.subr.mxu0 0.0
    %734 = vmatpush2.msra.mxu0 0.0
    %735 = vmatprep.subr.mxu0 0.0
    %736 = vmatpush2.msra.mxu0 0.0
    %737 = vmatprep.subr.mxu0 0.0
    %738 = vmatpush2.msra.mxu0 0.0
    %739 = vmatprep.subr.mxu0 0.0
    %740 = vmatpush2.msra.mxu0 0.0
    %741 = vmatprep.mubr.f32.mxu0 0.0
    %742 = vmatmul.mubr.f32.gmra.mxu0 %v675
    %v743 = vpop.f32.mrf.mxu0
    %v744 = vadd.f32 0.0, %v743
    %v745 = vpop.f32.mrf.mxu0
    %746 = vdwg.mxu0
    %v748 = vsel %vm37, %v671, 0
    %750 = vmatprep.subr.mxu0 0.0
    %751 = vmatpush1.msra.mxu0 0.0
    %752 = vmatprep.subr.mxu0 0.0
    %753 = vmatpush1.msra.mxu0 0.0
    %754 = vmatprep.subr.mxu0 0.0
    %755 = vmatpush1.msra.mxu0 0.0
    %756 = vmatprep.subr.mxu0 0.0
    %757 = vmatpush1.msra.mxu0 0.0
    %758 = vmatprep.subr.mxu0 0.0
    %759 = vmatpush1.msra.mxu0 0.0
    %760 = vmatprep.subr.mxu0 0.0
    %761 = vmatpush1.msra.mxu0 0.0
    %762 = vmatprep.subr.mxu0 0.0
    %763 = vmatpush1.msra.mxu0 0.0
    %764 = vmatprep.subr.mxu0 0.0
    %765 = vmatpush1.msra.mxu0 0.0
    %766 = vmatprep.subr.mxu0 0.0
    %767 = vmatpush1.msra.mxu0 0.0
    %768 = vmatprep.subr.mxu0 0.0
    %769 = vmatpush1.msra.mxu0 0.0
    %770 = vmatprep.subr.mxu0 0.0
    %771 = vmatpush1.msra.mxu0 0.0
    %772 = vmatprep.subr.mxu0 0.0
    %773 = vmatpush1.msra.mxu0 0.0
    %774 = vmatprep.subr.mxu0 0.0
    %775 = vmatpush1.msra.mxu0 0.0
    %776 = vmatprep.subr.mxu0 0.0
    %777 = vmatpush1.msra.mxu0 0.0
    %778 = vmatprep.subr.mxu0 0.0
    %779 = vmatpush1.msra.mxu0 0.0
    %780 = vmatprep.subr.mxu0 0.0
    %781 = vmatpush1.msra.mxu0 %v666
    %782 = vmatprep.subr.mxu0 0.0
    %783 = vmatpush2.msra.mxu0 0.0
    %784 = vmatprep.subr.mxu0 0.0
    %785 = vmatpush2.msra.mxu0 0.0
    %786 = vmatprep.subr.mxu0 0.0
    %787 = vmatpush2.msra.mxu0 0.0
    %788 = vmatprep.subr.mxu0 0.0
    %789 = vmatpush2.msra.mxu0 0.0
    %790 = vmatprep.subr.mxu0 0.0
    %791 = vmatpush2.msra.mxu0 0.0
    %792 = vmatprep.subr.mxu0 0.0
    %793 = vmatpush2.msra.mxu0 0.0
    %794 = vmatprep.subr.mxu0 0.0
    %795 = vmatpush2.msra.mxu0 0.0
    %796 = vmatprep.subr.mxu0 0.0
    %797 = vmatpush2.msra.mxu0 0.0
    %798 = vmatprep.subr.mxu0 0.0
    %799 = vmatpush2.msra.mxu0 0.0
    %800 = vmatprep.subr.mxu0 0.0
    %801 = vmatpush2.msra.mxu0 0.0
    %802 = vmatprep.subr.mxu0 0.0
    %803 = vmatpush2.msra.mxu0 0.0
    %804 = vmatprep.subr.mxu0 0.0
    %805 = vmatpush2.msra.mxu0 0.0
    %806 = vmatprep.subr.mxu0 0.0
    %807 = vmatpush2.msra.mxu0 0.0
    %808 = vmatprep.subr.mxu0 0.0
    %809 = vmatpush2.msra.mxu0 0.0
    %810 = vmatprep.subr.mxu0 0.0
    %811 = vmatpush2.msra.mxu0 0.0
    %812 = vmatprep.subr.mxu0 0.0
    %813 = vmatpush2.msra.mxu0 0.0
    %814 = vmatprep.mubr.f32.mxu0 0.0
    %815 = vmatmul.mubr.f32.gmra.mxu0 %v748
    %v816 = vpop.f32.mrf.mxu0
    %v817 = vadd.f32 0.0, %v816
    %v818 = vpop.f32.mrf.mxu0
    %819 = vdwg.mxu0
    %v821 = vsel %vm37, %v672, 0
    %823 = vmatprep.subr.mxu0 0.0
    %824 = vmatpush1.msra.mxu0 0.0
    %825 = vmatprep.subr.mxu0 0.0
    %826 = vmatpush1.msra.mxu0 0.0
    %827 = vmatprep.subr.mxu0 0.0
    %828 = vmatpush1.msra.mxu0 0.0
    %829 = vmatprep.subr.mxu0 0.0
    %830 = vmatpush1.msra.mxu0 0.0
    %831 = vmatprep.subr.mxu0 0.0
    %832 = vmatpush1.msra.mxu0 0.0
    %833 = vmatprep.subr.mxu0 0.0
    %834 = vmatpush1.msra.mxu0 0.0
    %835 = vmatprep.subr.mxu0 0.0
    %836 = vmatpush1.msra.mxu0 0.0
    %837 = vmatprep.subr.mxu0 0.0
    %838 = vmatpush1.msra.mxu0 0.0
    %839 = vmatprep.subr.mxu0 0.0
    %840 = vmatpush1.msra.mxu0 0.0
    %841 = vmatprep.subr.mxu0 0.0
    %842 = vmatpush1.msra.mxu0 0.0
    %843 = vmatprep.subr.mxu0 0.0
    %844 = vmatpush1.msra.mxu0 0.0
    %845 = vmatprep.subr.mxu0 0.0
    %846 = vmatpush1.msra.mxu0 0.0
    %847 = vmatprep.subr.mxu0 0.0
    %848 = vmatpush1.msra.mxu0 0.0
    %849 = vmatprep.subr.mxu0 0.0
    %850 = vmatpush1.msra.mxu0 0.0
    %851 = vmatprep.subr.mxu0 0.0
    %852 = vmatpush1.msra.mxu0 0.0
    %853 = vmatprep.subr.mxu0 0.0
    %854 = vmatpush1.msra.mxu0 %v667
    %855 = vmatprep.subr.mxu0 0.0
    %856 = vmatpush2.msra.mxu0 0.0
    %857 = vmatprep.subr.mxu0 0.0
    %858 = vmatpush2.msra.mxu0 0.0
    %859 = vmatprep.subr.mxu0 0.0
    %860 = vmatpush2.msra.mxu0 0.0
    %861 = vmatprep.subr.mxu0 0.0
    %862 = vmatpush2.msra.mxu0 0.0
    %863 = vmatprep.subr.mxu0 0.0
    %864 = vmatpush2.msra.mxu0 0.0
    %865 = vmatprep.subr.mxu0 0.0
    %866 = vmatpush2.msra.mxu0 0.0
    %867 = vmatprep.subr.mxu0 0.0
    %868 = vmatpush2.msra.mxu0 0.0
    %869 = vmatprep.subr.mxu0 0.0
    %870 = vmatpush2.msra.mxu0 0.0
    %871 = vmatprep.subr.mxu0 0.0
    %872 = vmatpush2.msra.mxu0 0.0
    %873 = vmatprep.subr.mxu0 0.0
    %874 = vmatpush2.msra.mxu0 0.0
    %875 = vmatprep.subr.mxu0 0.0
    %876 = vmatpush2.msra.mxu0 0.0
    %877 = vmatprep.subr.mxu0 0.0
    %878 = vmatpush2.msra.mxu0 0.0
    %879 = vmatprep.subr.mxu0 0.0
    %880 = vmatpush2.msra.mxu0 0.0
    %881 = vmatprep.subr.mxu0 0.0
    %882 = vmatpush2.msra.mxu0 0.0
    %883 = vmatprep.subr.mxu0 0.0
    %884 = vmatpush2.msra.mxu0 0.0
    %885 = vmatprep.subr.mxu0 0.0
    %886 = vmatpush2.msra.mxu0 0.0
    %887 = vmatprep.mubr.f32.mxu0 0.0
    %888 = vmatmul.mubr.f32.gmra.mxu0 %v821
    %v889 = vpop.f32.mrf.mxu0
    %v890 = vadd.f32 0.0, %v889
    %v891 = vpop.f32.mrf.mxu0
    %892 = vdwg.mxu0
    %v894 = vsel %vm37, %v673, 0
    %896 = vmatprep.subr.mxu0 0.0
    %897 = vmatpush1.msra.mxu0 0.0
    %898 = vmatprep.subr.mxu0 0.0
    %899 = vmatpush1.msra.mxu0 0.0
    %900 = vmatprep.subr.mxu0 0.0
    %901 = vmatpush1.msra.mxu0 0.0
    %902 = vmatprep.subr.mxu0 0.0
    %903 = vmatpush1.msra.mxu0 0.0
    %904 = vmatprep.subr.mxu0 0.0
    %905 = vmatpush1.msra.mxu0 0.0
    %906 = vmatprep.subr.mxu0 0.0
    %907 = vmatpush1.msra.mxu0 0.0
    %908 = vmatprep.subr.mxu0 0.0
    %909 = vmatpush1.msra.mxu0 0.0
    %910 = vmatprep.subr.mxu0 0.0
    %911 = vmatpush1.msra.mxu0 0.0
    %912 = vmatprep.subr.mxu0 0.0
    %913 = vmatpush1.msra.mxu0 0.0
    %914 = vmatprep.subr.mxu0 0.0
    %915 = vmatpush1.msra.mxu0 0.0
    %916 = vmatprep.subr.mxu0 0.0
    %917 = vmatpush1.msra.mxu0 0.0
    %918 = vmatprep.subr.mxu0 0.0
    %919 = vmatpush1.msra.mxu0 0.0
    %920 = vmatprep.subr.mxu0 0.0
    %921 = vmatpush1.msra.mxu0 0.0
    %922 = vmatprep.subr.mxu0 0.0
    %923 = vmatpush1.msra.mxu0 0.0
    %924 = vmatprep.subr.mxu0 0.0
    %925 = vmatpush1.msra.mxu0 0.0
    %926 = vmatprep.subr.mxu0 0.0
    %927 = vmatpush1.msra.mxu0 %v668
    %928 = vmatprep.subr.mxu0 0.0
    %929 = vmatpush2.msra.mxu0 0.0
    %930 = vmatprep.subr.mxu0 0.0
    %931 = vmatpush2.msra.mxu0 0.0
    %932 = vmatprep.subr.mxu0 0.0
    %933 = vmatpush2.msra.mxu0 0.0
    %934 = vmatprep.subr.mxu0 0.0
    %935 = vmatpush2.msra.mxu0 0.0
    %936 = vmatprep.subr.mxu0 0.0
    %937 = vmatpush2.msra.mxu0 0.0
    %938 = vmatprep.subr.mxu0 0.0
    %939 = vmatpush2.msra.mxu0 0.0
    %940 = vmatprep.subr.mxu0 0.0
    %941 = vmatpush2.msra.mxu0 0.0
    %942 = vmatprep.subr.mxu0 0.0
    %943 = vmatpush2.msra.mxu0 0.0
    %944 = vmatprep.subr.mxu0 0.0
    %945 = vmatpush2.msra.mxu0 0.0
    %946 = vmatprep.subr.mxu0 0.0
    %947 = vmatpush2.msra.mxu0 0.0
    %948 = vmatprep.subr.mxu0 0.0
    %949 = vmatpush2.msra.mxu0 0.0
    %950 = vmatprep.subr.mxu0 0.0
    %951 = vmatpush2.msra.mxu0 0.0
    %952 = vmatprep.subr.mxu0 0.0
    %953 = vmatpush2.msra.mxu0 0.0
    %954 = vmatprep.subr.mxu0 0.0
    %955 = vmatpush2.msra.mxu0 0.0
    %956 = vmatprep.subr.mxu0 0.0
    %957 = vmatpush2.msra.mxu0 0.0
    %958 = vmatprep.subr.mxu0 0.0
    %959 = vmatpush2.msra.mxu0 0.0
    %960 = vmatprep.mubr.f32.mxu0 0.0
    %961 = vmatmul.mubr.f32.gmra.mxu0 %v894
    %v962 = vpop.f32.mrf.mxu0
    %v963 = vadd.f32 0.0, %v962
    %v964 = vpop.f32.mrf.mxu0
    %965 = vdwg.mxu0
    %970 = vrot.lane.b32.xlu0 %v744, 4
    %v971 = vpop.permute.xlu0 %970
    %972 = vrot.lane.b32.xlu0 %v817, 4
    %v973 = vpop.permute.xlu0 %972
    %974 = vrot.lane.b32.xlu0 %v890, 4
    %v975 = vpop.permute.xlu0 %974
    %976 = vrot.lane.b32.xlu0 %v963, 4
    %v977 = vpop.permute.xlu0 %976
    %vm982 = vcmask 31744
    %v983 = vsel %vm982, %v665, %v971
    %v984 = vsel %vm982, %v666, %v973
    %v985 = vsel %vm982, %v667, %v975
    %v986 = vsel %vm982, %v668, %v977
    %s987 = scalar_lea.vmem [#allocation2], 96
    %v988 = vld [vmem:[%s987] sm:$0xff]
    %v989 = vld [vmem:[%s987 + $0x8] sm:$0xff]
    %v990 = vld [vmem:[%s987 + $0x10] sm:$0xff]
    %v991 = vld [vmem:[%s987 + $0x18] sm:$0xff]
    %v993 = vsel %vm37, %v988, 0
    %995 = vmatprep.subr.mxu0 0.0
    %996 = vmatpush1.msra.mxu0 0.0
    %997 = vmatprep.subr.mxu0 0.0
    %998 = vmatpush1.msra.mxu0 0.0
    %999 = vmatprep.subr.mxu0 0.0
    %1000 = vmatpush1.msra.mxu0 0.0
    %1001 = vmatprep.subr.mxu0 0.0
    %1002 = vmatpush1.msra.mxu0 0.0
    %1003 = vmatprep.subr.mxu0 0.0
    %1004 = vmatpush1.msra.mxu0 0.0
    %1005 = vmatprep.subr.mxu0 0.0
    %1006 = vmatpush1.msra.mxu0 0.0
    %1007 = vmatprep.subr.mxu0 0.0
    %1008 = vmatpush1.msra.mxu0 0.0
    %1009 = vmatprep.subr.mxu0 0.0
    %1010 = vmatpush1.msra.mxu0 0.0
    %1011 = vmatprep.subr.mxu0 0.0
    %1012 = vmatpush1.msra.mxu0 0.0
    %1013 = vmatprep.subr.mxu0 0.0
    %1014 = vmatpush1.msra.mxu0 0.0
    %1015 = vmatprep.subr.mxu0 0.0
    %1016 = vmatpush1.msra.mxu0 0.0
    %1017 = vmatprep.subr.mxu0 0.0
    %1018 = vmatpush1.msra.mxu0 0.0
    %1019 = vmatprep.subr.mxu0 0.0
    %1020 = vmatpush1.msra.mxu0 0.0
    %1021 = vmatprep.subr.mxu0 0.0
    %1022 = vmatpush1.msra.mxu0 0.0
    %1023 = vmatprep.subr.mxu0 0.0
    %1024 = vmatpush1.msra.mxu0 0.0
    %1025 = vmatprep.subr.mxu0 0.0
    %1026 = vmatpush1.msra.mxu0 %v983
    %1027 = vmatprep.subr.mxu0 0.0
    %1028 = vmatpush2.msra.mxu0 0.0
    %1029 = vmatprep.subr.mxu0 0.0
    %1030 = vmatpush2.msra.mxu0 0.0
    %1031 = vmatprep.subr.mxu0 0.0
    %1032 = vmatpush2.msra.mxu0 0.0
    %1033 = vmatprep.subr.mxu0 0.0
    %1034 = vmatpush2.msra.mxu0 0.0
    %1035 = vmatprep.subr.mxu0 0.0
    %1036 = vmatpush2.msra.mxu0 0.0
    %1037 = vmatprep.subr.mxu0 0.0
    %1038 = vmatpush2.msra.mxu0 0.0
    %1039 = vmatprep.subr.mxu0 0.0
    %1040 = vmatpush2.msra.mxu0 0.0
    %1041 = vmatprep.subr.mxu0 0.0
    %1042 = vmatpush2.msra.mxu0 0.0
    %1043 = vmatprep.subr.mxu0 0.0
    %1044 = vmatpush2.msra.mxu0 0.0
    %1045 = vmatprep.subr.mxu0 0.0
    %1046 = vmatpush2.msra.mxu0 0.0
    %1047 = vmatprep.subr.mxu0 0.0
    %1048 = vmatpush2.msra.mxu0 0.0
    %1049 = vmatprep.subr.mxu0 0.0
    %1050 = vmatpush2.msra.mxu0 0.0
    %1051 = vmatprep.subr.mxu0 0.0
    %1052 = vmatpush2.msra.mxu0 0.0
    %1053 = vmatprep.subr.mxu0 0.0
    %1054 = vmatpush2.msra.mxu0 0.0
    %1055 = vmatprep.subr.mxu0 0.0
    %1056 = vmatpush2.msra.mxu0 0.0
    %1057 = vmatprep.subr.mxu0 0.0
    %1058 = vmatpush2.msra.mxu0 0.0
    %1059 = vmatprep.mubr.f32.mxu0 0.0
    %1060 = vmatmul.mubr.f32.gmra.mxu0 %v993
    %v1061 = vpop.f32.mrf.mxu0
    %v1062 = vadd.f32 0.0, %v1061
    %v1063 = vpop.f32.mrf.mxu0
    %1064 = vdwg.mxu0
    %v1066 = vsel %vm37, %v989, 0
    %1068 = vmatprep.subr.mxu0 0.0
    %1069 = vmatpush1.msra.mxu0 0.0
    %1070 = vmatprep.subr.mxu0 0.0
    %1071 = vmatpush1.msra.mxu0 0.0
    %1072 = vmatprep.subr.mxu0 0.0
    %1073 = vmatpush1.msra.mxu0 0.0
    %1074 = vmatprep.subr.mxu0 0.0
    %1075 = vmatpush1.msra.mxu0 0.0
    %1076 = vmatprep.subr.mxu0 0.0
    %1077 = vmatpush1.msra.mxu0 0.0
    %1078 = vmatprep.subr.mxu0 0.0
    %1079 = vmatpush1.msra.mxu0 0.0
    %1080 = vmatprep.subr.mxu0 0.0
    %1081 = vmatpush1.msra.mxu0 0.0
    %1082 = vmatprep.subr.mxu0 0.0
    %1083 = vmatpush1.msra.mxu0 0.0
    %1084 = vmatprep.subr.mxu0 0.0
    %1085 = vmatpush1.msra.mxu0 0.0
    %1086 = vmatprep.subr.mxu0 0.0
    %1087 = vmatpush1.msra.mxu0 0.0
    %1088 = vmatprep.subr.mxu0 0.0
    %1089 = vmatpush1.msra.mxu0 0.0
    %1090 = vmatprep.subr.mxu0 0.0
    %1091 = vmatpush1.msra.mxu0 0.0
    %1092 = vmatprep.subr.mxu0 0.0
    %1093 = vmatpush1.msra.mxu0 0.0
    %1094 = vmatprep.subr.mxu0 0.0
    %1095 = vmatpush1.msra.mxu0 0.0
    %1096 = vmatprep.subr.mxu0 0.0
    %1097 = vmatpush1.msra.mxu0 0.0
    %1098 = vmatprep.subr.mxu0 0.0
    %1099 = vmatpush1.msra.mxu0 %v984
    %1100 = vmatprep.subr.mxu0 0.0
    %1101 = vmatpush2.msra.mxu0 0.0
    %1102 = vmatprep.subr.mxu0 0.0
    %1103 = vmatpush2.msra.mxu0 0.0
    %1104 = vmatprep.subr.mxu0 0.0
    %1105 = vmatpush2.msra.mxu0 0.0
    %1106 = vmatprep.subr.mxu0 0.0
    %1107 = vmatpush2.msra.mxu0 0.0
    %1108 = vmatprep.subr.mxu0 0.0
    %1109 = vmatpush2.msra.mxu0 0.0
    %1110 = vmatprep.subr.mxu0 0.0
    %1111 = vmatpush2.msra.mxu0 0.0
    %1112 = vmatprep.subr.mxu0 0.0
    %1113 = vmatpush2.msra.mxu0 0.0
    %1114 = vmatprep.subr.mxu0 0.0
    %1115 = vmatpush2.msra.mxu0 0.0
    %1116 = vmatprep.subr.mxu0 0.0
    %1117 = vmatpush2.msra.mxu0 0.0
    %1118 = vmatprep.subr.mxu0 0.0
    %1119 = vmatpush2.msra.mxu0 0.0
    %1120 = vmatprep.subr.mxu0 0.0
    %1121 = vmatpush2.msra.mxu0 0.0
    %1122 = vmatprep.subr.mxu0 0.0
    %1123 = vmatpush2.msra.mxu0 0.0
    %1124 = vmatprep.subr.mxu0 0.0
    %1125 = vmatpush2.msra.mxu0 0.0
    %1126 = vmatprep.subr.mxu0 0.0
    %1127 = vmatpush2.msra.mxu0 0.0
    %1128 = vmatprep.subr.mxu0 0.0
    %1129 = vmatpush2.msra.mxu0 0.0
    %1130 = vmatprep.subr.mxu0 0.0
    %1131 = vmatpush2.msra.mxu0 0.0
    %1132 = vmatprep.mubr.f32.mxu0 0.0
    %1133 = vmatmul.mubr.f32.gmra.mxu0 %v1066
    %v1134 = vpop.f32.mrf.mxu0
    %v1135 = vadd.f32 0.0, %v1134
    %v1136 = vpop.f32.mrf.mxu0
    %1137 = vdwg.mxu0
    %v1139 = vsel %vm37, %v990, 0
    %1141 = vmatprep.subr.mxu0 0.0
    %1142 = vmatpush1.msra.mxu0 0.0
    %1143 = vmatprep.subr.mxu0 0.0
    %1144 = vmatpush1.msra.mxu0 0.0
    %1145 = vmatprep.subr.mxu0 0.0
    %1146 = vmatpush1.msra.mxu0 0.0
    %1147 = vmatprep.subr.mxu0 0.0
    %1148 = vmatpush1.msra.mxu0 0.0
    %1149 = vmatprep.subr.mxu0 0.0
    %1150 = vmatpush1.msra.mxu0 0.0
    %1151 = vmatprep.subr.mxu0 0.0
    %1152 = vmatpush1.msra.mxu0 0.0
    %1153 = vmatprep.subr.mxu0 0.0
    %1154 = vmatpush1.msra.mxu0 0.0
    %1155 = vmatprep.subr.mxu0 0.0
    %1156 = vmatpush1.msra.mxu0 0.0
    %1157 = vmatprep.subr.mxu0 0.0
    %1158 = vmatpush1.msra.mxu0 0.0
    %1159 = vmatprep.subr.mxu0 0.0
    %1160 = vmatpush1.msra.mxu0 0.0
    %1161 = vmatprep.subr.mxu0 0.0
    %1162 = vmatpush1.msra.mxu0 0.0
    %1163 = vmatprep.subr.mxu0 0.0
    %1164 = vmatpush1.msra.mxu0 0.0
    %1165 = vmatprep.subr.mxu0 0.0
    %1166 = vmatpush1.msra.mxu0 0.0
    %1167 = vmatprep.subr.mxu0 0.0
    %1168 = vmatpush1.msra.mxu0 0.0
    %1169 = vmatprep.subr.mxu0 0.0
    %1170 = vmatpush1.msra.mxu0 0.0
    %1171 = vmatprep.subr.mxu0 0.0
    %1172 = vmatpush1.msra.mxu0 %v985
    %1173 = vmatprep.subr.mxu0 0.0
    %1174 = vmatpush2.msra.mxu0 0.0
    %1175 = vmatprep.subr.mxu0 0.0
    %1176 = vmatpush2.msra.mxu0 0.0
    %1177 = vmatprep.subr.mxu0 0.0
    %1178 = vmatpush2.msra.mxu0 0.0
    %1179 = vmatprep.subr.mxu0 0.0
    %1180 = vmatpush2.msra.mxu0 0.0
    %1181 = vmatprep.subr.mxu0 0.0
    %1182 = vmatpush2.msra.mxu0 0.0
    %1183 = vmatprep.subr.mxu0 0.0
    %1184 = vmatpush2.msra.mxu0 0.0
    %1185 = vmatprep.subr.mxu0 0.0
    %1186 = vmatpush2.msra.mxu0 0.0
    %1187 = vmatprep.subr.mxu0 0.0
    %1188 = vmatpush2.msra.mxu0 0.0
    %1189 = vmatprep.subr.mxu0 0.0
    %1190 = vmatpush2.msra.mxu0 0.0
    %1191 = vmatprep.subr.mxu0 0.0
    %1192 = vmatpush2.msra.mxu0 0.0
    %1193 = vmatprep.subr.mxu0 0.0
    %1194 = vmatpush2.msra.mxu0 0.0
    %1195 = vmatprep.subr.mxu0 0.0
    %1196 = vmatpush2.msra.mxu0 0.0
    %1197 = vmatprep.subr.mxu0 0.0
    %1198 = vmatpush2.msra.mxu0 0.0
    %1199 = vmatprep.subr.mxu0 0.0
    %1200 = vmatpush2.msra.mxu0 0.0
    %1201 = vmatprep.subr.mxu0 0.0
    %1202 = vmatpush2.msra.mxu0 0.0
    %1203 = vmatprep.subr.mxu0 0.0
    %1204 = vmatpush2.msra.mxu0 0.0
    %1205 = vmatprep.mubr.f32.mxu0 0.0
    %1206 = vmatmul.mubr.f32.gmra.mxu0 %v1139
    %v1207 = vpop.f32.mrf.mxu0
    %v1208 = vadd.f32 0.0, %v1207
    %v1209 = vpop.f32.mrf.mxu0
    %1210 = vdwg.mxu0
    %v1212 = vsel %vm37, %v991, 0
    %1214 = vmatprep.subr.mxu0 0.0
    %1215 = vmatpush1.msra.mxu0 0.0
    %1216 = vmatprep.subr.mxu0 0.0
    %1217 = vmatpush1.msra.mxu0 0.0
    %1218 = vmatprep.subr.mxu0 0.0
    %1219 = vmatpush1.msra.mxu0 0.0
    %1220 = vmatprep.subr.mxu0 0.0
    %1221 = vmatpush1.msra.mxu0 0.0
    %1222 = vmatprep.subr.mxu0 0.0
    %1223 = vmatpush1.msra.mxu0 0.0
    %1224 = vmatprep.subr.mxu0 0.0
    %1225 = vmatpush1.msra.mxu0 0.0
    %1226 = vmatprep.subr.mxu0 0.0
    %1227 = vmatpush1.msra.mxu0 0.0
    %1228 = vmatprep.subr.mxu0 0.0
    %1229 = vmatpush1.msra.mxu0 0.0
    %1230 = vmatprep.subr.mxu0 0.0
    %1231 = vmatpush1.msra.mxu0 0.0
    %1232 = vmatprep.subr.mxu0 0.0
    %1233 = vmatpush1.msra.mxu0 0.0
    %1234 = vmatprep.subr.mxu0 0.0
    %1235 = vmatpush1.msra.mxu0 0.0
    %1236 = vmatprep.subr.mxu0 0.0
    %1237 = vmatpush1.msra.mxu0 0.0
    %1238 = vmatprep.subr.mxu0 0.0
    %1239 = vmatpush1.msra.mxu0 0.0
    %1240 = vmatprep.subr.mxu0 0.0
    %1241 = vmatpush1.msra.mxu0 0.0
    %1242 = vmatprep.subr.mxu0 0.0
    %1243 = vmatpush1.msra.mxu0 0.0
    %1244 = vmatprep.subr.mxu0 0.0
    %1245 = vmatpush1.msra.mxu0 %v986
    %1246 = vmatprep.subr.mxu0 0.0
    %1247 = vmatpush2.msra.mxu0 0.0
    %1248 = vmatprep.subr.mxu0 0.0
    %1249 = vmatpush2.msra.mxu0 0.0
    %1250 = vmatprep.subr.mxu0 0.0
    %1251 = vmatpush2.msra.mxu0 0.0
    %1252 = vmatprep.subr.mxu0 0.0
    %1253 = vmatpush2.msra.mxu0 0.0
    %1254 = vmatprep.subr.mxu0 0.0
    %1255 = vmatpush2.msra.mxu0 0.0
    %1256 = vmatprep.subr.mxu0 0.0
    %1257 = vmatpush2.msra.mxu0 0.0
    %1258 = vmatprep.subr.mxu0 0.0
    %1259 = vmatpush2.msra.mxu0 0.0
    %1260 = vmatprep.subr.mxu0 0.0
    %1261 = vmatpush2.msra.mxu0 0.0
    %1262 = vmatprep.subr.mxu0 0.0
    %1263 = vmatpush2.msra.mxu0 0.0
    %1264 = vmatprep.subr.mxu0 0.0
    %1265 = vmatpush2.msra.mxu0 0.0
    %1266 = vmatprep.subr.mxu0 0.0
    %1267 = vmatpush2.msra.mxu0 0.0
    %1268 = vmatprep.subr.mxu0 0.0
    %1269 = vmatpush2.msra.mxu0 0.0
    %1270 = vmatprep.subr.mxu0 0.0
    %1271 = vmatpush2.msra.mxu0 0.0
    %1272 = vmatprep.subr.mxu0 0.0
    %1273 = vmatpush2.msra.mxu0 0.0
    %1274 = vmatprep.subr.mxu0 0.0
    %1275 = vmatpush2.msra.mxu0 0.0
    %1276 = vmatprep.subr.mxu0 0.0
    %1277 = vmatpush2.msra.mxu0 0.0
    %1278 = vmatprep.mubr.f32.mxu0 0.0
    %1279 = vmatmul.mubr.f32.gmra.mxu0 %v1212
    %v1280 = vpop.f32.mrf.mxu0
    %v1281 = vadd.f32 0.0, %v1280
    %v1282 = vpop.f32.mrf.mxu0
    %1283 = vdwg.mxu0
    %1288 = vrot.lane.b32.xlu0 %v1062, 8
    %v1289 = vpop.permute.xlu0 %1288
    %1290 = vrot.lane.b32.xlu0 %v1135, 8
    %v1291 = vpop.permute.xlu0 %1290
    %1292 = vrot.lane.b32.xlu0 %v1208, 8
    %v1293 = vpop.permute.xlu0 %1292
    %1294 = vrot.lane.b32.xlu0 %v1281, 8
    %v1295 = vpop.permute.xlu0 %1294
    %v1300 = vsel %vm37, %v983, %v1289
    %v1301 = vsel %vm37, %v984, %v1291
    %v1302 = vsel %vm37, %v985, %v1293
    %v1303 = vsel %vm37, %v986, %v1295
    %v1304 = vld [vmem:[%s2] sm:$0x1]
    %v1305 = vld [vmem:[%s2 + $0x1] sm:$0x1]
    %v1306 = vld [vmem:[%s2 + $0x2] sm:$0x1]
    %v1307 = vld [vmem:[%s2 + $0x3] sm:$0x1]
    %v1309 = vsel %vm37, %v1304, 0
    %1311 = vmatprep.subr.mxu0 0.0
    %1312 = vmatpush1.msra.mxu0 0.0
    %1313 = vmatprep.subr.mxu0 0.0
    %1314 = vmatpush1.msra.mxu0 0.0
    %1315 = vmatprep.subr.mxu0 0.0
    %1316 = vmatpush1.msra.mxu0 0.0
    %1317 = vmatprep.subr.mxu0 0.0
    %1318 = vmatpush1.msra.mxu0 0.0
    %1319 = vmatprep.subr.mxu0 0.0
    %1320 = vmatpush1.msra.mxu0 0.0
    %1321 = vmatprep.subr.mxu0 0.0
    %1322 = vmatpush1.msra.mxu0 0.0
    %1323 = vmatprep.subr.mxu0 0.0
    %1324 = vmatpush1.msra.mxu0 0.0
    %1325 = vmatprep.subr.mxu0 0.0
    %1326 = vmatpush1.msra.mxu0 0.0
    %1327 = vmatprep.subr.mxu0 0.0
    %1328 = vmatpush1.msra.mxu0 0.0
    %1329 = vmatprep.subr.mxu0 0.0
    %1330 = vmatpush1.msra.mxu0 0.0
    %1331 = vmatprep.subr.mxu0 0.0
    %1332 = vmatpush1.msra.mxu0 0.0
    %1333 = vmatprep.subr.mxu0 0.0
    %1334 = vmatpush1.msra.mxu0 0.0
    %1335 = vmatprep.subr.mxu0 0.0
    %1336 = vmatpush1.msra.mxu0 0.0
    %1337 = vmatprep.subr.mxu0 0.0
    %1338 = vmatpush1.msra.mxu0 0.0
    %1339 = vmatprep.subr.mxu0 0.0
    %1340 = vmatpush1.msra.mxu0 0.0
    %1341 = vmatprep.subr.mxu0 0.0
    %1342 = vmatpush1.msra.mxu0 %v1300
    %1343 = vmatprep.subr.mxu0 0.0
    %1344 = vmatpush2.msra.mxu0 0.0
    %1345 = vmatprep.subr.mxu0 0.0
    %1346 = vmatpush2.msra.mxu0 0.0
    %1347 = vmatprep.subr.mxu0 0.0
    %1348 = vmatpush2.msra.mxu0 0.0
    %1349 = vmatprep.subr.mxu0 0.0
    %1350 = vmatpush2.msra.mxu0 0.0
    %1351 = vmatprep.subr.mxu0 0.0
    %1352 = vmatpush2.msra.mxu0 0.0
    %1353 = vmatprep.subr.mxu0 0.0
    %1354 = vmatpush2.msra.mxu0 0.0
    %1355 = vmatprep.subr.mxu0 0.0
    %1356 = vmatpush2.msra.mxu0 0.0
    %1357 = vmatprep.subr.mxu0 0.0
    %1358 = vmatpush2.msra.mxu0 0.0
    %1359 = vmatprep.subr.mxu0 0.0
    %1360 = vmatpush2.msra.mxu0 0.0
    %1361 = vmatprep.subr.mxu0 0.0
    %1362 = vmatpush2.msra.mxu0 0.0
    %1363 = vmatprep.subr.mxu0 0.0
    %1364 = vmatpush2.msra.mxu0 0.0
    %1365 = vmatprep.subr.mxu0 0.0
    %1366 = vmatpush2.msra.mxu0 0.0
    %1367 = vmatprep.subr.mxu0 0.0
    %1368 = vmatpush2.msra.mxu0 0.0
    %1369 = vmatprep.subr.mxu0 0.0
    %1370 = vmatpush2.msra.mxu0 0.0
    %1371 = vmatprep.subr.mxu0 0.0
    %1372 = vmatpush2.msra.mxu0 0.0
    %1373 = vmatprep.subr.mxu0 0.0
    %1374 = vmatpush2.msra.mxu0 0.0
    %1375 = vmatprep.mubr.f32.mxu0 0.0
    %1376 = vmatmul.mubr.f32.gmra.mxu0 %v1309
    %v1377 = vpop.f32.mrf.mxu0
    %v1378 = vadd.f32 0.0, %v1377
    %v1379 = vpop.f32.mrf.mxu0
    %1380 = vdwg.mxu0
    %v1382 = vsel %vm37, %v1305, 0
    %1384 = vmatprep.subr.mxu0 0.0
    %1385 = vmatpush1.msra.mxu0 0.0
    %1386 = vmatprep.subr.mxu0 0.0
    %1387 = vmatpush1.msra.mxu0 0.0
    %1388 = vmatprep.subr.mxu0 0.0
    %1389 = vmatpush1.msra.mxu0 0.0
    %1390 = vmatprep.subr.mxu0 0.0
    %1391 = vmatpush1.msra.mxu0 0.0
    %1392 = vmatprep.subr.mxu0 0.0
    %1393 = vmatpush1.msra.mxu0 0.0
    %1394 = vmatprep.subr.mxu0 0.0
    %1395 = vmatpush1.msra.mxu0 0.0
    %1396 = vmatprep.subr.mxu0 0.0
    %1397 = vmatpush1.msra.mxu0 0.0
    %1398 = vmatprep.subr.mxu0 0.0
    %1399 = vmatpush1.msra.mxu0 0.0
    %1400 = vmatprep.subr.mxu0 0.0
    %1401 = vmatpush1.msra.mxu0 0.0
    %1402 = vmatprep.subr.mxu0 0.0
    %1403 = vmatpush1.msra.mxu0 0.0
    %1404 = vmatprep.subr.mxu0 0.0
    %1405 = vmatpush1.msra.mxu0 0.0
    %1406 = vmatprep.subr.mxu0 0.0
    %1407 = vmatpush1.msra.mxu0 0.0
    %1408 = vmatprep.subr.mxu0 0.0
    %1409 = vmatpush1.msra.mxu0 0.0
    %1410 = vmatprep.subr.mxu0 0.0
    %1411 = vmatpush1.msra.mxu0 0.0
    %1412 = vmatprep.subr.mxu0 0.0
    %1413 = vmatpush1.msra.mxu0 0.0
    %1414 = vmatprep.subr.mxu0 0.0
    %1415 = vmatpush1.msra.mxu0 %v1301
    %1416 = vmatprep.subr.mxu0 0.0
    %1417 = vmatpush2.msra.mxu0 0.0
    %1418 = vmatprep.subr.mxu0 0.0
    %1419 = vmatpush2.msra.mxu0 0.0
    %1420 = vmatprep.subr.mxu0 0.0
    %1421 = vmatpush2.msra.mxu0 0.0
    %1422 = vmatprep.subr.mxu0 0.0
    %1423 = vmatpush2.msra.mxu0 0.0
    %1424 = vmatprep.subr.mxu0 0.0
    %1425 = vmatpush2.msra.mxu0 0.0
    %1426 = vmatprep.subr.mxu0 0.0
    %1427 = vmatpush2.msra.mxu0 0.0
    %1428 = vmatprep.subr.mxu0 0.0
    %1429 = vmatpush2.msra.mxu0 0.0
    %1430 = vmatprep.subr.mxu0 0.0
    %1431 = vmatpush2.msra.mxu0 0.0
    %1432 = vmatprep.subr.mxu0 0.0
    %1433 = vmatpush2.msra.mxu0 0.0
    %1434 = vmatprep.subr.mxu0 0.0
    %1435 = vmatpush2.msra.mxu0 0.0
    %1436 = vmatprep.subr.mxu0 0.0
    %1437 = vmatpush2.msra.mxu0 0.0
    %1438 = vmatprep.subr.mxu0 0.0
    %1439 = vmatpush2.msra.mxu0 0.0
    %1440 = vmatprep.subr.mxu0 0.0
    %1441 = vmatpush2.msra.mxu0 0.0
    %1442 = vmatprep.subr.mxu0 0.0
    %1443 = vmatpush2.msra.mxu0 0.0
    %1444 = vmatprep.subr.mxu0 0.0
    %1445 = vmatpush2.msra.mxu0 0.0
    %1446 = vmatprep.subr.mxu0 0.0
    %1447 = vmatpush2.msra.mxu0 0.0
    %1448 = vmatprep.mubr.f32.mxu0 0.0
    %1449 = vmatmul.mubr.f32.gmra.mxu0 %v1382
    %v1450 = vpop.f32.mrf.mxu0
    %v1451 = vadd.f32 0.0, %v1450
    %v1452 = vpop.f32.mrf.mxu0
    %1453 = vdwg.mxu0
    %v1455 = vsel %vm37, %v1306, 0
    %1457 = vmatprep.subr.mxu0 0.0
    %1458 = vmatpush1.msra.mxu0 0.0
    %1459 = vmatprep.subr.mxu0 0.0
    %1460 = vmatpush1.msra.mxu0 0.0
    %1461 = vmatprep.subr.mxu0 0.0
    %1462 = vmatpush1.msra.mxu0 0.0
    %1463 = vmatprep.subr.mxu0 0.0
    %1464 = vmatpush1.msra.mxu0 0.0
    %1465 = vmatprep.subr.mxu0 0.0
    %1466 = vmatpush1.msra.mxu0 0.0
    %1467 = vmatprep.subr.mxu0 0.0
    %1468 = vmatpush1.msra.mxu0 0.0
    %1469 = vmatprep.subr.mxu0 0.0
    %1470 = vmatpush1.msra.mxu0 0.0
    %1471 = vmatprep.subr.mxu0 0.0
    %1472 = vmatpush1.msra.mxu0 0.0
    %1473 = vmatprep.subr.mxu0 0.0
    %1474 = vmatpush1.msra.mxu0 0.0
    %1475 = vmatprep.subr.mxu0 0.0
    %1476 = vmatpush1.msra.mxu0 0.0
    %1477 = vmatprep.subr.mxu0 0.0
    %1478 = vmatpush1.msra.mxu0 0.0
    %1479 = vmatprep.subr.mxu0 0.0
    %1480 = vmatpush1.msra.mxu0 0.0
    %1481 = vmatprep.subr.mxu0 0.0
    %1482 = vmatpush1.msra.mxu0 0.0
    %1483 = vmatprep.subr.mxu0 0.0
    %1484 = vmatpush1.msra.mxu0 0.0
    %1485 = vmatprep.subr.mxu0 0.0
    %1486 = vmatpush1.msra.mxu0 0.0
    %1487 = vmatprep.subr.mxu0 0.0
    %1488 = vmatpush1.msra.mxu0 %v1302
    %1489 = vmatprep.subr.mxu0 0.0
    %1490 = vmatpush2.msra.mxu0 0.0
    %1491 = vmatprep.subr.mxu0 0.0
    %1492 = vmatpush2.msra.mxu0 0.0
    %1493 = vmatprep.subr.mxu0 0.0
    %1494 = vmatpush2.msra.mxu0 0.0
    %1495 = vmatprep.subr.mxu0 0.0
    %1496 = vmatpush2.msra.mxu0 0.0
    %1497 = vmatprep.subr.mxu0 0.0
    %1498 = vmatpush2.msra.mxu0 0.0
    %1499 = vmatprep.subr.mxu0 0.0
    %1500 = vmatpush2.msra.mxu0 0.0
    %1501 = vmatprep.subr.mxu0 0.0
    %1502 = vmatpush2.msra.mxu0 0.0
    %1503 = vmatprep.subr.mxu0 0.0
    %1504 = vmatpush2.msra.mxu0 0.0
    %1505 = vmatprep.subr.mxu0 0.0
    %1506 = vmatpush2.msra.mxu0 0.0
    %1507 = vmatprep.subr.mxu0 0.0
    %1508 = vmatpush2.msra.mxu0 0.0
    %1509 = vmatprep.subr.mxu0 0.0
    %1510 = vmatpush2.msra.mxu0 0.0
    %1511 = vmatprep.subr.mxu0 0.0
    %1512 = vmatpush2.msra.mxu0 0.0
    %1513 = vmatprep.subr.mxu0 0.0
    %1514 = vmatpush2.msra.mxu0 0.0
    %1515 = vmatprep.subr.mxu0 0.0
    %1516 = vmatpush2.msra.mxu0 0.0
    %1517 = vmatprep.subr.mxu0 0.0
    %1518 = vmatpush2.msra.mxu0 0.0
    %1519 = vmatprep.subr.mxu0 0.0
    %1520 = vmatpush2.msra.mxu0 0.0
    %1521 = vmatprep.mubr.f32.mxu0 0.0
    %1522 = vmatmul.mubr.f32.gmra.mxu0 %v1455
    %v1523 = vpop.f32.mrf.mxu0
    %v1524 = vadd.f32 0.0, %v1523
    %v1525 = vpop.f32.mrf.mxu0
    %1526 = vdwg.mxu0
    %v1528 = vsel %vm37, %v1307, 0
    %1530 = vmatprep.subr.mxu0 0.0
    %1531 = vmatpush1.msra.mxu0 0.0
    %1532 = vmatprep.subr.mxu0 0.0
    %1533 = vmatpush1.msra.mxu0 0.0
    %1534 = vmatprep.subr.mxu0 0.0
    %1535 = vmatpush1.msra.mxu0 0.0
    %1536 = vmatprep.subr.mxu0 0.0
    %1537 = vmatpush1.msra.mxu0 0.0
    %1538 = vmatprep.subr.mxu0 0.0
    %1539 = vmatpush1.msra.mxu0 0.0
    %1540 = vmatprep.subr.mxu0 0.0
    %1541 = vmatpush1.msra.mxu0 0.0
    %1542 = vmatprep.subr.mxu0 0.0
    %1543 = vmatpush1.msra.mxu0 0.0
    %1544 = vmatprep.subr.mxu0 0.0
    %1545 = vmatpush1.msra.mxu0 0.0
    %1546 = vmatprep.subr.mxu0 0.0
    %1547 = vmatpush1.msra.mxu0 0.0
    %1548 = vmatprep.subr.mxu0 0.0
    %1549 = vmatpush1.msra.mxu0 0.0
    %1550 = vmatprep.subr.mxu0 0.0
    %1551 = vmatpush1.msra.mxu0 0.0
    %1552 = vmatprep.subr.mxu0 0.0
    %1553 = vmatpush1.msra.mxu0 0.0
    %1554 = vmatprep.subr.mxu0 0.0
    %1555 = vmatpush1.msra.mxu0 0.0
    %1556 = vmatprep.subr.mxu0 0.0
    %1557 = vmatpush1.msra.mxu0 0.0
    %1558 = vmatprep.subr.mxu0 0.0
    %1559 = vmatpush1.msra.mxu0 0.0
    %1560 = vmatprep.subr.mxu0 0.0
    %1561 = vmatpush1.msra.mxu0 %v1303
    %1562 = vmatprep.subr.mxu0 0.0
    %1563 = vmatpush2.msra.mxu0 0.0
    %1564 = vmatprep.subr.mxu0 0.0
    %1565 = vmatpush2.msra.mxu0 0.0
    %1566 = vmatprep.subr.mxu0 0.0
    %1567 = vmatpush2.msra.mxu0 0.0
    %1568 = vmatprep.subr.mxu0 0.0
    %1569 = vmatpush2.msra.mxu0 0.0
    %1570 = vmatprep.subr.mxu0 0.0
    %1571 = vmatpush2.msra.mxu0 0.0
    %1572 = vmatprep.subr.mxu0 0.0
    %1573 = vmatpush2.msra.mxu0 0.0
    %1574 = vmatprep.subr.mxu0 0.0
    %1575 = vmatpush2.msra.mxu0 0.0
    %1576 = vmatprep.subr.mxu0 0.0
    %1577 = vmatpush2.msra.mxu0 0.0
    %1578 = vmatprep.subr.mxu0 0.0
    %1579 = vmatpush2.msra.mxu0 0.0
    %1580 = vmatprep.subr.mxu0 0.0
    %1581 = vmatpush2.msra.mxu0 0.0
    %1582 = vmatprep.subr.mxu0 0.0
    %1583 = vmatpush2.msra.mxu0 0.0
    %1584 = vmatprep.subr.mxu0 0.0
    %1585 = vmatpush2.msra.mxu0 0.0
    %1586 = vmatprep.subr.mxu0 0.0
    %1587 = vmatpush2.msra.mxu0 0.0
    %1588 = vmatprep.subr.mxu0 0.0
    %1589 = vmatpush2.msra.mxu0 0.0
    %1590 = vmatprep.subr.mxu0 0.0
    %1591 = vmatpush2.msra.mxu0 0.0
    %1592 = vmatprep.subr.mxu0 0.0
    %1593 = vmatpush2.msra.mxu0 0.0
    %1594 = vmatprep.mubr.f32.mxu0 0.0
    %1595 = vmatmul.mubr.f32.gmra.mxu0 %v1528
    %v1596 = vpop.f32.mrf.mxu0
    %v1597 = vadd.f32 0.0, %v1596
    %v1598 = vpop.f32.mrf.mxu0
    %1599 = vdwg.mxu0
    %vm1600 = vcmask 122880
    %1601 = vst.msk [vmem:[#allocation5] sm:$0x1] %vm1600, %v1378
    %1602 = vst.msk [vmem:[#allocation5 + $0x1] sm:$0x1] %vm1600, %v1451
    %1603 = vst.msk [vmem:[#allocation5 + $0x2] sm:$0x1] %vm1600, %v1524
    %1604 = vst.msk [vmem:[#allocation5 + $0x3] sm:$0x1] %vm1600, %v1597
    %s1605 = scalar_lea.vmem %s2, 4
    %v1606 = vld [vmem:[%s1605] sm:$0x1]
    %v1607 = vld [vmem:[%s1605 + $0x1] sm:$0x1]
    %v1608 = vld [vmem:[%s1605 + $0x2] sm:$0x1]
    %v1609 = vld [vmem:[%s1605 + $0x3] sm:$0x1]
    %v1611 = vsel %vm37, %v1606, 0
    %1613 = vmatprep.subr.mxu0 0.0
    %1614 = vmatpush1.msra.mxu0 0.0
    %1615 = vmatprep.subr.mxu0 0.0
    %1616 = vmatpush1.msra.mxu0 0.0
    %1617 = vmatprep.subr.mxu0 0.0
    %1618 = vmatpush1.msra.mxu0 0.0
    %1619 = vmatprep.subr.mxu0 0.0
    %1620 = vmatpush1.msra.mxu0 0.0
    %1621 = vmatprep.subr.mxu0 0.0
    %1622 = vmatpush1.msra.mxu0 0.0
    %1623 = vmatprep.subr.mxu0 0.0
    %1624 = vmatpush1.msra.mxu0 0.0
    %1625 = vmatprep.subr.mxu0 0.0
    %1626 = vmatpush1.msra.mxu0 0.0
    %1627 = vmatprep.subr.mxu0 0.0
    %1628 = vmatpush1.msra.mxu0 0.0
    %1629 = vmatprep.subr.mxu0 0.0
    %1630 = vmatpush1.msra.mxu0 0.0
    %1631 = vmatprep.subr.mxu0 0.0
    %1632 = vmatpush1.msra.mxu0 0.0
    %1633 = vmatprep.subr.mxu0 0.0
    %1634 = vmatpush1.msra.mxu0 0.0
    %1635 = vmatprep.subr.mxu0 0.0
    %1636 = vmatpush1.msra.mxu0 0.0
    %1637 = vmatprep.subr.mxu0 0.0
    %1638 = vmatpush1.msra.mxu0 0.0
    %1639 = vmatprep.subr.mxu0 0.0
    %1640 = vmatpush1.msra.mxu0 0.0
    %1641 = vmatprep.subr.mxu0 0.0
    %1642 = vmatpush1.msra.mxu0 0.0
    %1643 = vmatprep.subr.mxu0 0.0
    %1644 = vmatpush1.msra.mxu0 %v1300
    %1645 = vmatprep.subr.mxu0 0.0
    %1646 = vmatpush2.msra.mxu0 0.0
    %1647 = vmatprep.subr.mxu0 0.0
    %1648 = vmatpush2.msra.mxu0 0.0
    %1649 = vmatprep.subr.mxu0 0.0
    %1650 = vmatpush2.msra.mxu0 0.0
    %1651 = vmatprep.subr.mxu0 0.0
    %1652 = vmatpush2.msra.mxu0 0.0
    %1653 = vmatprep.subr.mxu0 0.0
    %1654 = vmatpush2.msra.mxu0 0.0
    %1655 = vmatprep.subr.mxu0 0.0
    %1656 = vmatpush2.msra.mxu0 0.0
    %1657 = vmatprep.subr.mxu0 0.0
    %1658 = vmatpush2.msra.mxu0 0.0
    %1659 = vmatprep.subr.mxu0 0.0
    %1660 = vmatpush2.msra.mxu0 0.0
    %1661 = vmatprep.subr.mxu0 0.0
    %1662 = vmatpush2.msra.mxu0 0.0
    %1663 = vmatprep.subr.mxu0 0.0
    %1664 = vmatpush2.msra.mxu0 0.0
    %1665 = vmatprep.subr.mxu0 0.0
    %1666 = vmatpush2.msra.mxu0 0.0
    %1667 = vmatprep.subr.mxu0 0.0
    %1668 = vmatpush2.msra.mxu0 0.0
    %1669 = vmatprep.subr.mxu0 0.0
    %1670 = vmatpush2.msra.mxu0 0.0
    %1671 = vmatprep.subr.mxu0 0.0
    %1672 = vmatpush2.msra.mxu0 0.0
    %1673 = vmatprep.subr.mxu0 0.0
    %1674 = vmatpush2.msra.mxu0 0.0
    %1675 = vmatprep.subr.mxu0 0.0
    %1676 = vmatpush2.msra.mxu0 0.0
    %1677 = vmatprep.mubr.f32.mxu0 0.0
    %1678 = vmatmul.mubr.f32.gmra.mxu0 %v1611
    %v1679 = vpop.f32.mrf.mxu0
    %v1680 = vadd.f32 0.0, %v1679
    %v1681 = vpop.f32.mrf.mxu0
    %1682 = vdwg.mxu0
    %v1684 = vsel %vm37, %v1607, 0
    %1686 = vmatprep.subr.mxu0 0.0
    %1687 = vmatpush1.msra.mxu0 0.0
    %1688 = vmatprep.subr.mxu0 0.0
    %1689 = vmatpush1.msra.mxu0 0.0
    %1690 = vmatprep.subr.mxu0 0.0
    %1691 = vmatpush1.msra.mxu0 0.0
    %1692 = vmatprep.subr.mxu0 0.0
    %1693 = vmatpush1.msra.mxu0 0.0
    %1694 = vmatprep.subr.mxu0 0.0
    %1695 = vmatpush1.msra.mxu0 0.0
    %1696 = vmatprep.subr.mxu0 0.0
    %1697 = vmatpush1.msra.mxu0 0.0
    %1698 = vmatprep.subr.mxu0 0.0
    %1699 = vmatpush1.msra.mxu0 0.0
    %1700 = vmatprep.subr.mxu0 0.0
    %1701 = vmatpush1.msra.mxu0 0.0
    %1702 = vmatprep.subr.mxu0 0.0
    %1703 = vmatpush1.msra.mxu0 0.0
    %1704 = vmatprep.subr.mxu0 0.0
    %1705 = vmatpush1.msra.mxu0 0.0
    %1706 = vmatprep.subr.mxu0 0.0
    %1707 = vmatpush1.msra.mxu0 0.0
    %1708 = vmatprep.subr.mxu0 0.0
    %1709 = vmatpush1.msra.mxu0 0.0
    %1710 = vmatprep.subr.mxu0 0.0
    %1711 = vmatpush1.msra.mxu0 0.0
    %1712 = vmatprep.subr.mxu0 0.0
    %1713 = vmatpush1.msra.mxu0 0.0
    %1714 = vmatprep.subr.mxu0 0.0
    %1715 = vmatpush1.msra.mxu0 0.0
    %1716 = vmatprep.subr.mxu0 0.0
    %1717 = vmatpush1.msra.mxu0 %v1301
    %1718 = vmatprep.subr.mxu0 0.0
    %1719 = vmatpush2.msra.mxu0 0.0
    %1720 = vmatprep.subr.mxu0 0.0
    %1721 = vmatpush2.msra.mxu0 0.0
    %1722 = vmatprep.subr.mxu0 0.0
    %1723 = vmatpush2.msra.mxu0 0.0
    %1724 = vmatprep.subr.mxu0 0.0
    %1725 = vmatpush2.msra.mxu0 0.0
    %1726 = vmatprep.subr.mxu0 0.0
    %1727 = vmatpush2.msra.mxu0 0.0
    %1728 = vmatprep.subr.mxu0 0.0
    %1729 = vmatpush2.msra.mxu0 0.0
    %1730 = vmatprep.subr.mxu0 0.0
    %1731 = vmatpush2.msra.mxu0 0.0
    %1732 = vmatprep.subr.mxu0 0.0
    %1733 = vmatpush2.msra.mxu0 0.0
    %1734 = vmatprep.subr.mxu0 0.0
    %1735 = vmatpush2.msra.mxu0 0.0
    %1736 = vmatprep.subr.mxu0 0.0
    %1737 = vmatpush2.msra.mxu0 0.0
    %1738 = vmatprep.subr.mxu0 0.0
    %1739 = vmatpush2.msra.mxu0 0.0
    %1740 = vmatprep.subr.mxu0 0.0
    %1741 = vmatpush2.msra.mxu0 0.0
    %1742 = vmatprep.subr.mxu0 0.0
    %1743 = vmatpush2.msra.mxu0 0.0
    %1744 = vmatprep.subr.mxu0 0.0
    %1745 = vmatpush2.msra.mxu0 0.0
    %1746 = vmatprep.subr.mxu0 0.0
    %1747 = vmatpush2.msra.mxu0 0.0
    %1748 = vmatprep.subr.mxu0 0.0
    %1749 = vmatpush2.msra.mxu0 0.0
    %1750 = vmatprep.mubr.f32.mxu0 0.0
    %1751 = vmatmul.mubr.f32.gmra.mxu0 %v1684
    %v1752 = vpop.f32.mrf.mxu0
    %v1753 = vadd.f32 0.0, %v1752
    %v1754 = vpop.f32.mrf.mxu0
    %1755 = vdwg.mxu0
    %v1757 = vsel %vm37, %v1608, 0
    %1759 = vmatprep.subr.mxu0 0.0
    %1760 = vmatpush1.msra.mxu0 0.0
    %1761 = vmatprep.subr.mxu0 0.0
    %1762 = vmatpush1.msra.mxu0 0.0
    %1763 = vmatprep.subr.mxu0 0.0
    %1764 = vmatpush1.msra.mxu0 0.0
    %1765 = vmatprep.subr.mxu0 0.0
    %1766 = vmatpush1.msra.mxu0 0.0
    %1767 = vmatprep.subr.mxu0 0.0
    %1768 = vmatpush1.msra.mxu0 0.0
    %1769 = vmatprep.subr.mxu0 0.0
    %1770 = vmatpush1.msra.mxu0 0.0
    %1771 = vmatprep.subr.mxu0 0.0
    %1772 = vmatpush1.msra.mxu0 0.0
    %1773 = vmatprep.subr.mxu0 0.0
    %1774 = vmatpush1.msra.mxu0 0.0
    %1775 = vmatprep.subr.mxu0 0.0
    %1776 = vmatpush1.msra.mxu0 0.0
    %1777 = vmatprep.subr.mxu0 0.0
    %1778 = vmatpush1.msra.mxu0 0.0
    %1779 = vmatprep.subr.mxu0 0.0
    %1780 = vmatpush1.msra.mxu0 0.0
    %1781 = vmatprep.subr.mxu0 0.0
    %1782 = vmatpush1.msra.mxu0 0.0
    %1783 = vmatprep.subr.mxu0 0.0
    %1784 = vmatpush1.msra.mxu0 0.0
    %1785 = vmatprep.subr.mxu0 0.0
    %1786 = vmatpush1.msra.mxu0 0.0
    %1787 = vmatprep.subr.mxu0 0.0
    %1788 = vmatpush1.msra.mxu0 0.0
    %1789 = vmatprep.subr.mxu0 0.0
    %1790 = vmatpush1.msra.mxu0 %v1302
    %1791 = vmatprep.subr.mxu0 0.0
    %1792 = vmatpush2.msra.mxu0 0.0
    %1793 = vmatprep.subr.mxu0 0.0
    %1794 = vmatpush2.msra.mxu0 0.0
    %1795 = vmatprep.subr.mxu0 0.0
    %1796 = vmatpush2.msra.mxu0 0.0
    %1797 = vmatprep.subr.mxu0 0.0
    %1798 = vmatpush2.msra.mxu0 0.0
    %1799 = vmatprep.subr.mxu0 0.0
    %1800 = vmatpush2.msra.mxu0 0.0
    %1801 = vmatprep.subr.mxu0 0.0
    %1802 = vmatpush2.msra.mxu0 0.0
    %1803 = vmatprep.subr.mxu0 0.0
    %1804 = vmatpush2.msra.mxu0 0.0
    %1805 = vmatprep.subr.mxu0 0.0
    %1806 = vmatpush2.msra.mxu0 0.0
    %1807 = vmatprep.subr.mxu0 0.0
    %1808 = vmatpush2.msra.mxu0 0.0
    %1809 = vmatprep.subr.mxu0 0.0
    %1810 = vmatpush2.msra.mxu0 0.0
    %1811 = vmatprep.subr.mxu0 0.0
    %1812 = vmatpush2.msra.mxu0 0.0
    %1813 = vmatprep.subr.mxu0 0.0
    %1814 = vmatpush2.msra.mxu0 0.0
    %1815 = vmatprep.subr.mxu0 0.0
    %1816 = vmatpush2.msra.mxu0 0.0
    %1817 = vmatprep.subr.mxu0 0.0
    %1818 = vmatpush2.msra.mxu0 0.0
    %1819 = vmatprep.subr.mxu0 0.0
    %1820 = vmatpush2.msra.mxu0 0.0
    %1821 = vmatprep.subr.mxu0 0.0
    %1822 = vmatpush2.msra.mxu0 0.0
    %1823 = vmatprep.mubr.f32.mxu0 0.0
    %1824 = vmatmul.mubr.f32.gmra.mxu0 %v1757
    %v1825 = vpop.f32.mrf.mxu0
    %v1826 = vadd.f32 0.0, %v1825
    %v1827 = vpop.f32.mrf.mxu0
    %1828 = vdwg.mxu0
    %v1830 = vsel %vm37, %v1609, 0
    %1832 = vmatprep.subr.mxu0 0.0
    %1833 = vmatpush1.msra.mxu0 0.0
    %1834 = vmatprep.subr.mxu0 0.0
    %1835 = vmatpush1.msra.mxu0 0.0
    %1836 = vmatprep.subr.mxu0 0.0
    %1837 = vmatpush1.msra.mxu0 0.0
    %1838 = vmatprep.subr.mxu0 0.0
    %1839 = vmatpush1.msra.mxu0 0.0
    %1840 = vmatprep.subr.mxu0 0.0
    %1841 = vmatpush1.msra.mxu0 0.0
    %1842 = vmatprep.subr.mxu0 0.0
    %1843 = vmatpush1.msra.mxu0 0.0
    %1844 = vmatprep.subr.mxu0 0.0
    %1845 = vmatpush1.msra.mxu0 0.0
    %1846 = vmatprep.subr.mxu0 0.0
    %1847 = vmatpush1.msra.mxu0 0.0
    %1848 = vmatprep.subr.mxu0 0.0
    %1849 = vmatpush1.msra.mxu0 0.0
    %1850 = vmatprep.subr.mxu0 0.0
    %1851 = vmatpush1.msra.mxu0 0.0
    %1852 = vmatprep.subr.mxu0 0.0
    %1853 = vmatpush1.msra.mxu0 0.0
    %1854 = vmatprep.subr.mxu0 0.0
    %1855 = vmatpush1.msra.mxu0 0.0
    %1856 = vmatprep.subr.mxu0 0.0
    %1857 = vmatpush1.msra.mxu0 0.0
    %1858 = vmatprep.subr.mxu0 0.0
    %1859 = vmatpush1.msra.mxu0 0.0
    %1860 = vmatprep.subr.mxu0 0.0
    %1861 = vmatpush1.msra.mxu0 0.0
    %1862 = vmatprep.subr.mxu0 0.0
    %1863 = vmatpush1.msra.mxu0 %v1303
    %1864 = vmatprep.subr.mxu0 0.0
    %1865 = vmatpush2.msra.mxu0 0.0
    %1866 = vmatprep.subr.mxu0 0.0
    %1867 = vmatpush2.msra.mxu0 0.0
    %1868 = vmatprep.subr.mxu0 0.0
    %1869 = vmatpush2.msra.mxu0 0.0
    %1870 = vmatprep.subr.mxu0 0.0
    %1871 = vmatpush2.msra.mxu0 0.0
    %1872 = vmatprep.subr.mxu0 0.0
    %1873 = vmatpush2.msra.mxu0 0.0
    %1874 = vmatprep.subr.mxu0 0.0
    %1875 = vmatpush2.msra.mxu0 0.0
    %1876 = vmatprep.subr.mxu0 0.0
    %1877 = vmatpush2.msra.mxu0 0.0
    %1878 = vmatprep.subr.mxu0 0.0
    %1879 = vmatpush2.msra.mxu0 0.0
    %1880 = vmatprep.subr.mxu0 0.0
    %1881 = vmatpush2.msra.mxu0 0.0
    %1882 = vmatprep.subr.mxu0 0.0
    %1883 = vmatpush2.msra.mxu0 0.0
    %1884 = vmatprep.subr.mxu0 0.0
    %1885 = vmatpush2.msra.mxu0 0.0
    %1886 = vmatprep.subr.mxu0 0.0
    %1887 = vmatpush2.msra.mxu0 0.0
    %1888 = vmatprep.subr.mxu0 0.0
    %1889 = vmatpush2.msra.mxu0 0.0
    %1890 = vmatprep.subr.mxu0 0.0
    %1891 = vmatpush2.msra.mxu0 0.0
    %1892 = vmatprep.subr.mxu0 0.0
    %1893 = vmatpush2.msra.mxu0 0.0
    %1894 = vmatprep.subr.mxu0 0.0
    %1895 = vmatpush2.msra.mxu0 0.0
    %1896 = vmatprep.mubr.f32.mxu0 0.0
    %1897 = vmatmul.mubr.f32.gmra.mxu0 %v1830
    %v1898 = vpop.f32.mrf.mxu0
    %v1899 = vadd.f32 0.0, %v1898
    %v1900 = vpop.f32.mrf.mxu0
    %1901 = vdwg.mxu0
    %s1902 = scalar_lea.vmem [#allocation5], 4
    %1903 = vst.msk [vmem:[%s1902] sm:$0x1] %vm1600, %v1680
    %1904 = vst.msk [vmem:[%s1902 + $0x1] sm:$0x1] %vm1600, %v1753
    %1905 = vst.msk [vmem:[%s1902 + $0x2] sm:$0x1] %vm1600, %v1826
    %1906 = vst.msk [vmem:[%s1902 + $0x3] sm:$0x1] %vm1600, %v1899
    // Predicated region
    $region18: #{tpu_custom_call.1} parent=1 // pred_check
      _
    $region19: #{tpu_custom_call.1} parent=1 // pred_check_branch
      %1908 = sbr.rel (0) target = $region21
    $region20: #{tpu_custom_call.1} parent=1 // pred_region
      %s1910 = ssub.s32 128, 128
      %1911 = vsyncadd [#allocation4], %s1910
      %s1912 = sshll.u32 [#allocation5], 4
      %s1913 = int_to_ptr.vmem [resolvable:$true] %s1912
      %1918 = dma.vmem_to_hbm [thread:$0]  %s1913, 128, %s3, [#allocation4], 16, 16, 1
    $region21: #{tpu_custom_call.1} parent=1 // pred_fallthru
      _
    // Predicated region
    $region22: #{tpu_custom_call.1} parent=1 // pred_check
      _
    $region23: #{tpu_custom_call.1} parent=1 // pred_check_branch
      %1920 = sbr.rel (0) target = $region25
    $region24: #{tpu_custom_call.1} parent=1 // pred_region
      %1921 = dma.done [#allocation4], 128
    $region25: #{tpu_custom_call.1} parent=1 // pred_fallthru
      _
    %1922 = vsyncpa [#allocation3], 1
    %1923 = vsyncpa [#allocation4], 1

</llo_original>
